<compile_context>
chip_gen: v7x
topology: tpu7x:2x2x1
jax: 0.10.0
libtpu: 0.0.40
codegen_flags: <defaults>
</compile_context>

<pallas_src>
import jax
import jax.numpy as jnp
from jax.experimental import pallas as pl
from jax.experimental.pallas import tpu as pltpu

_IN, _H1, _H2, _OUT = 7, 10, 5, 2
_PACK = 8                         # sublanes per feature slab
_LANE = 128                       # f32 lane width
_ROW_ALIGN = _PACK * _LANE        # batch-tile granularity: 1024 rows


def _mlp_kernel(x_ref, w1_ref, b1_ref, w2_ref, b2_ref, w3_ref, b3_ref, out_ref):
    # x_ref:   (7, 8, L) VMEM  -- feature-major; batch packed 8 sublanes x L lanes
    # w*_ref:  (in, out) SMEM, b*_ref: (out,) SMEM -> scalar reads
    # out_ref: (2, 8, L) VMEM  -- lane-dense class slabs
    x = [x_ref[f] for f in range(_IN)]            # each (8, L): full-vreg slabs

    def dense(slabs, w_ref, b_ref, n_in, n_out, relu):
        outs = []
        for j in range(n_out):
            acc = slabs[0] * w_ref[0, j]          # scalar * (8, L) slab (VPU)
            for i in range(1, n_in):
                acc = acc + slabs[i] * w_ref[i, j]
            acc = acc + b_ref[j]
            if relu:
                acc = jnp.maximum(acc, 0.0)
            outs.append(acc)
        return outs

    h1 = dense(x, w1_ref, b1_ref, _IN, _H1, relu=True)      # 10 slabs
    h2 = dense(h1, w2_ref, b2_ref, _H1, _H2, relu=True)     # 5 slabs
    z0, z1 = dense(h2, w3_ref, b3_ref, _H2, _OUT, relu=False)

    # 2-class log_softmax, closed form: 1 exp + 1 log per element (EUP), no XLU.
    d = z1 - z0
    m = jnp.maximum(z0, z1)
    lse = m + jnp.log(1.0 + jnp.exp(-jnp.abs(d)))
    out_ref[0] = z0 - lse
    out_ref[1] = z1 - lse


def reference_forward(x, params):
    # Pure-JAX reference (also the small/mid-batch fast path).
    w1, b1, w2, b2, w3, b3 = params
    h1 = jnp.maximum(x @ w1 + b1, 0.0)
    h2 = jnp.maximum(h1 @ w2 + b2, 0.0)
    logits = h2 @ w3 + b3
    return jax.nn.log_softmax(logits, axis=1)


def _pick_tile(B, tb_max):
    # Aim for >= ~8 grid steps (megacore sharding + pipeline priming) while
    # keeping tiles as large as possible; tile rows must be a multiple of 1024
    # (8 sublanes x 128 lanes per feature slab).
    target = -(-B // 8)
    tb = ((target + _ROW_ALIGN - 1) // _ROW_ALIGN) * _ROW_ALIGN
    return int(max(_ROW_ALIGN, min(tb_max, tb)))


def classifier_forward(x, params, *, tb=None, tb_max=65536, min_kernel_batch=8192):
    """x: (B, 7) f32 -> (B, 2) log-probabilities. Matches Classifier_.forward."""
    w1, b1, w2, b2, w3, b3 = params
    B = x.shape[0]

    if B < min_kernel_batch:
        # Below ~8K rows the pad/pack and a single grid step dominate; the
        # fused-XLA path is faster.
        return reference_forward(x, params)

    if tb is None:
        tb = _pick_tile(B, tb_max)
    assert tb % _ROW_ALIGN == 0, "tile must be a multiple of 1024 rows"

    n_tiles = pl.cdiv(B, tb)
    Bp = n_tiles * tb
    L_tot = Bp // _PACK          # total lane columns
    L_blk = tb // _PACK          # lane columns per grid step

    # Pack the batch axis: xt[f, s, c] = x[s * (Bp/8) + c, f].
    # One fused transpose-copy under jit (layout plumbing, not compute).
    x = x.astype(jnp.float32)
    xp = x if Bp == B else jnp.zeros((Bp, _IN), jnp.float32).at[:B, :].set(x)
    xt = xp.T.reshape(_IN, _PACK, L_tot)

    smem = pl.BlockSpec(memory_space=pltpu.MemorySpace.SMEM)
    out_packed = pl.pallas_call(
        _mlp_kernel,
        out_shape=jax.ShapeDtypeStruct((_OUT, _PACK, L_tot), jnp.float32),
        grid=(n_tiles,),
        in_specs=[
            pl.BlockSpec((_IN, _PACK, L_blk), lambda i: (0, 0, i)),  # x tile
            smem, smem, smem, smem, smem, smem,                      # weights/biases
        ],
        out_specs=pl.BlockSpec((_OUT, _PACK, L_blk), lambda i: (0, 0, i)),
        compiler_params=pltpu.CompilerParams(
            dimension_semantics=("parallel",),
            vmem_limit_bytes=48 * 1024 * 1024,   # < v7x's 64 MiB physical VMEM
        ),
    )(xt, w1, b1, w2, b2, w3, b3)

    # Unpack: out_packed[k, s, c] -> row b = s * (Bp/8) + c.
    return out_packed.reshape(_OUT, Bp)[:, :B].T


def init_params(key):
    # Deterministic synthetic init. Weights stored (in, out); biases 1-D.
    k = jax.random.split(key, 6)
    w1 = jax.random.normal(k[0], (_IN, _H1), jnp.float32) * 0.3
    b1 = jax.random.normal(k[1], (_H1,), jnp.float32) * 0.1
    w2 = jax.random.normal(k[2], (_H1, _H2), jnp.float32) * 0.3
    b2 = jax.random.normal(k[3], (_H2,), jnp.float32) * 0.1
    w3 = jax.random.normal(k[4], (_H2, _OUT), jnp.float32) * 0.3
    b3 = jax.random.normal(k[5], (_OUT,), jnp.float32) * 0.1
    return (w1, b1, w2, b2, w3, b3)


if __name__ == "__main__":
    key = jax.random.PRNGKey(0)
    k_x, k_p = jax.random.split(key)
    params = init_params(k_p)

    # Kernel path: 8 pipelined 1024-row tiles (auto-picked tile size).
    x_big = jax.random.normal(k_x, (8192, _IN), jnp.float32)
    fwd = jax.jit(lambda xx: classifier_forward(xx, params))
    out_big = jax.block_until_ready(fwd(x_big))
    assert out_big.shape == (8192, _OUT)
    assert jnp.allclose(out_big, reference_forward(x_big, params),
                        atol=2e-5, rtol=1e-5)

    # Kernel path with a ragged batch (padded to a whole number of tiles).
    x_mid = jax.random.normal(k_x, (5000, _IN), jnp.float32)
    fwd_ragged = jax.jit(lambda xx: classifier_forward(xx, params, min_kernel_batch=0))
    out_mid = jax.block_until_ready(fwd_ragged(x_mid))
    assert out_mid.shape == (5000, _OUT)
    assert jnp.allclose(out_mid, reference_forward(x_mid, params),
                        atol=2e-5, rtol=1e-5)

    # Tiny batch: fused-XLA fallback (kernel not worth launching).
    x_small = jax.random.normal(k_x, (8, _IN), jnp.float32)
    out_small = jax.block_until_ready(classifier_forward(x_small, params))
    assert out_small.shape == (8, _OUT)
    assert jnp.allclose(out_small, reference_forward(x_small, params),
                        atol=2e-5, rtol=1e-5)

    print("KERNEL_OK")
</pallas_src>

<mosaic_0001>
module attributes {stable_mosaic.version = 11 : i64} {
  func.func @_mlp_kernel(%arg0: i32, %arg1: memref<7x8x128xf32, #tpu.memory_space<vmem>>, %arg2: memref<7x10xf32, #tpu.memory_space<smem>>, %arg3: memref<10xf32, #tpu.memory_space<smem>>, %arg4: memref<10x5xf32, #tpu.memory_space<smem>>, %arg5: memref<5xf32, #tpu.memory_space<smem>>, %arg6: memref<5x2xf32, #tpu.memory_space<smem>>, %arg7: memref<2xf32, #tpu.memory_space<smem>>, %arg8: memref<2x8x128xf32, #tpu.memory_space<vmem>>) attributes {dimension_semantics = [#tpu.dimension_semantics<parallel>], iteration_bounds = array<i64: 8>, scalar_prefetch = 0 : i64, scratch_operands = 0 : i64, tpu.core_type = #tpu.core_type<tc>, window_params = [{transform_indices = @transform_0, window_bounds = array<i64: 7, 8, 128>}, {transform_indices = @transform_1, window_bounds = array<i64: 7, 10>}, {transform_indices = @transform_2, window_bounds = array<i64: 10>}, {transform_indices = @transform_3, window_bounds = array<i64: 10, 5>}, {transform_indices = @transform_4, window_bounds = array<i64: 5>}, {transform_indices = @transform_5, window_bounds = array<i64: 5, 2>}, {transform_indices = @transform_6, window_bounds = array<i64: 2>}, {transform_indices = @transform_7, window_bounds = array<i64: 2, 8, 128>}]} {
    %c0 = arith.constant 0 : index
    %c0_0 = arith.constant 0 : index
    %c0_1 = arith.constant 0 : index
    %0 = vector.load %arg1[%c0, %c0_0, %c0_1] : memref<7x8x128xf32, #tpu.memory_space<vmem>>, vector<1x8x128xf32>
    %1 = vector.shape_cast %0 : vector<1x8x128xf32> to vector<8x128xf32>
    %c1 = arith.constant 1 : index
    %c0_2 = arith.constant 0 : index
    %c0_3 = arith.constant 0 : index
    %2 = vector.load %arg1[%c1, %c0_2, %c0_3] : memref<7x8x128xf32, #tpu.memory_space<vmem>>, vector<1x8x128xf32>
    %3 = vector.shape_cast %2 : vector<1x8x128xf32> to vector<8x128xf32>
    %c2 = arith.constant 2 : index
    %c0_4 = arith.constant 0 : index
    %c0_5 = arith.constant 0 : index
    %4 = vector.load %arg1[%c2, %c0_4, %c0_5] : memref<7x8x128xf32, #tpu.memory_space<vmem>>, vector<1x8x128xf32>
    %5 = vector.shape_cast %4 : vector<1x8x128xf32> to vector<8x128xf32>
    %c3 = arith.constant 3 : index
    %c0_6 = arith.constant 0 : index
    %c0_7 = arith.constant 0 : index
    %6 = vector.load %arg1[%c3, %c0_6, %c0_7] : memref<7x8x128xf32, #tpu.memory_space<vmem>>, vector<1x8x128xf32>
    %7 = vector.shape_cast %6 : vector<1x8x128xf32> to vector<8x128xf32>
    %c4 = arith.constant 4 : index
    %c0_8 = arith.constant 0 : index
    %c0_9 = arith.constant 0 : index
    %8 = vector.load %arg1[%c4, %c0_8, %c0_9] : memref<7x8x128xf32, #tpu.memory_space<vmem>>, vector<1x8x128xf32>
    %9 = vector.shape_cast %8 : vector<1x8x128xf32> to vector<8x128xf32>
    %c5 = arith.constant 5 : index
    %c0_10 = arith.constant 0 : index
    %c0_11 = arith.constant 0 : index
    %10 = vector.load %arg1[%c5, %c0_10, %c0_11] : memref<7x8x128xf32, #tpu.memory_space<vmem>>, vector<1x8x128xf32>
    %11 = vector.shape_cast %10 : vector<1x8x128xf32> to vector<8x128xf32>
    %c6 = arith.constant 6 : index
    %c0_12 = arith.constant 0 : index
    %c0_13 = arith.constant 0 : index
    %12 = vector.load %arg1[%c6, %c0_12, %c0_13] : memref<7x8x128xf32, #tpu.memory_space<vmem>>, vector<1x8x128xf32>
    %13 = vector.shape_cast %12 : vector<1x8x128xf32> to vector<8x128xf32>
    %c0_14 = arith.constant 0 : index
    %c0_15 = arith.constant 0 : index
    %14 = memref.load %arg2[%c0_14, %c0_15] : memref<7x10xf32, #tpu.memory_space<smem>>
    %15 = vector.broadcast %14 : f32 to vector<8x128xf32>
    %16 = arith.mulf %1, %15 : vector<8x128xf32>
    %c1_16 = arith.constant 1 : index
    %c0_17 = arith.constant 0 : index
    %17 = memref.load %arg2[%c1_16, %c0_17] : memref<7x10xf32, #tpu.memory_space<smem>>
    %18 = vector.broadcast %17 : f32 to vector<8x128xf32>
    %19 = arith.mulf %3, %18 : vector<8x128xf32>
    %20 = arith.addf %16, %19 : vector<8x128xf32>
    %c2_18 = arith.constant 2 : index
    %c0_19 = arith.constant 0 : index
    %21 = memref.load %arg2[%c2_18, %c0_19] : memref<7x10xf32, #tpu.memory_space<smem>>
    %22 = vector.broadcast %21 : f32 to vector<8x128xf32>
    %23 = arith.mulf %5, %22 : vector<8x128xf32>
    %24 = arith.addf %20, %23 : vector<8x128xf32>
    %c3_20 = arith.constant 3 : index
    %c0_21 = arith.constant 0 : index
    %25 = memref.load %arg2[%c3_20, %c0_21] : memref<7x10xf32, #tpu.memory_space<smem>>
    %26 = vector.broadcast %25 : f32 to vector<8x128xf32>
    %27 = arith.mulf %7, %26 : vector<8x128xf32>
    %28 = arith.addf %24, %27 : vector<8x128xf32>
    %c4_22 = arith.constant 4 : index
    %c0_23 = arith.constant 0 : index
    %29 = memref.load %arg2[%c4_22, %c0_23] : memref<7x10xf32, #tpu.memory_space<smem>>
    %30 = vector.broadcast %29 : f32 to vector<8x128xf32>
    %31 = arith.mulf %9, %30 : vector<8x128xf32>
    %32 = arith.addf %28, %31 : vector<8x128xf32>
    %c5_24 = arith.constant 5 : index
    %c0_25 = arith.constant 0 : index
    %33 = memref.load %arg2[%c5_24, %c0_25] : memref<7x10xf32, #tpu.memory_space<smem>>
    %34 = vector.broadcast %33 : f32 to vector<8x128xf32>
    %35 = arith.mulf %11, %34 : vector<8x128xf32>
    %36 = arith.addf %32, %35 : vector<8x128xf32>
    %c6_26 = arith.constant 6 : index
    %c0_27 = arith.constant 0 : index
    %37 = memref.load %arg2[%c6_26, %c0_27] : memref<7x10xf32, #tpu.memory_space<smem>>
    %38 = vector.broadcast %37 : f32 to vector<8x128xf32>
    %39 = arith.mulf %13, %38 : vector<8x128xf32>
    %40 = arith.addf %36, %39 : vector<8x128xf32>
    %c0_28 = arith.constant 0 : index
    %41 = memref.load %arg3[%c0_28] : memref<10xf32, #tpu.memory_space<smem>>
    %42 = vector.broadcast %41 : f32 to vector<8x128xf32>
    %43 = arith.addf %40, %42 : vector<8x128xf32>
    %cst = arith.constant 0.000000e+00 : f32
    %44 = vector.broadcast %cst : f32 to vector<8x128xf32>
    %45 = arith.maximumf %43, %44 : vector<8x128xf32>
    %c0_29 = arith.constant 0 : index
    %c1_30 = arith.constant 1 : index
    %46 = memref.load %arg2[%c0_29, %c1_30] : memref<7x10xf32, #tpu.memory_space<smem>>
    %47 = vector.broadcast %46 : f32 to vector<8x128xf32>
    %48 = arith.mulf %1, %47 : vector<8x128xf32>
    %c1_31 = arith.constant 1 : index
    %c1_32 = arith.constant 1 : index
    %49 = memref.load %arg2[%c1_31, %c1_32] : memref<7x10xf32, #tpu.memory_space<smem>>
    %50 = vector.broadcast %49 : f32 to vector<8x128xf32>
    %51 = arith.mulf %3, %50 : vector<8x128xf32>
    %52 = arith.addf %48, %51 : vector<8x128xf32>
    %c2_33 = arith.constant 2 : index
    %c1_34 = arith.constant 1 : index
    %53 = memref.load %arg2[%c2_33, %c1_34] : memref<7x10xf32, #tpu.memory_space<smem>>
    %54 = vector.broadcast %53 : f32 to vector<8x128xf32>
    %55 = arith.mulf %5, %54 : vector<8x128xf32>
    %56 = arith.addf %52, %55 : vector<8x128xf32>
    %c3_35 = arith.constant 3 : index
    %c1_36 = arith.constant 1 : index
    %57 = memref.load %arg2[%c3_35, %c1_36] : memref<7x10xf32, #tpu.memory_space<smem>>
    %58 = vector.broadcast %57 : f32 to vector<8x128xf32>
    %59 = arith.mulf %7, %58 : vector<8x128xf32>
    %60 = arith.addf %56, %59 : vector<8x128xf32>
    %c4_37 = arith.constant 4 : index
    %c1_38 = arith.constant 1 : index
    %61 = memref.load %arg2[%c4_37, %c1_38] : memref<7x10xf32, #tpu.memory_space<smem>>
    %62 = vector.broadcast %61 : f32 to vector<8x128xf32>
    %63 = arith.mulf %9, %62 : vector<8x128xf32>
    %64 = arith.addf %60, %63 : vector<8x128xf32>
    %c5_39 = arith.constant 5 : index
    %c1_40 = arith.constant 1 : index
    %65 = memref.load %arg2[%c5_39, %c1_40] : memref<7x10xf32, #tpu.memory_space<smem>>
    %66 = vector.broadcast %65 : f32 to vector<8x128xf32>
    %67 = arith.mulf %11, %66 : vector<8x128xf32>
    %68 = arith.addf %64, %67 : vector<8x128xf32>
    %c6_41 = arith.constant 6 : index
    %c1_42 = arith.constant 1 : index
    %69 = memref.load %arg2[%c6_41, %c1_42] : memref<7x10xf32, #tpu.memory_space<smem>>
    %70 = vector.broadcast %69 : f32 to vector<8x128xf32>
    %71 = arith.mulf %13, %70 : vector<8x128xf32>
    %72 = arith.addf %68, %71 : vector<8x128xf32>
    %c1_43 = arith.constant 1 : index
    %73 = memref.load %arg3[%c1_43] : memref<10xf32, #tpu.memory_space<smem>>
    %74 = vector.broadcast %73 : f32 to vector<8x128xf32>
    %75 = arith.addf %72, %74 : vector<8x128xf32>
    %cst_44 = arith.constant 0.000000e+00 : f32
    %76 = vector.broadcast %cst_44 : f32 to vector<8x128xf32>
    %77 = arith.maximumf %75, %76 : vector<8x128xf32>
    %c0_45 = arith.constant 0 : index
    %c2_46 = arith.constant 2 : index
    %78 = memref.load %arg2[%c0_45, %c2_46] : memref<7x10xf32, #tpu.memory_space<smem>>
    %79 = vector.broadcast %78 : f32 to vector<8x128xf32>
    %80 = arith.mulf %1, %79 : vector<8x128xf32>
    %c1_47 = arith.constant 1 : index
    %c2_48 = arith.constant 2 : index
    %81 = memref.load %arg2[%c1_47, %c2_48] : memref<7x10xf32, #tpu.memory_space<smem>>
    %82 = vector.broadcast %81 : f32 to vector<8x128xf32>
    %83 = arith.mulf %3, %82 : vector<8x128xf32>
    %84 = arith.addf %80, %83 : vector<8x128xf32>
    %c2_49 = arith.constant 2 : index
    %c2_50 = arith.constant 2 : index
    %85 = memref.load %arg2[%c2_49, %c2_50] : memref<7x10xf32, #tpu.memory_space<smem>>
    %86 = vector.broadcast %85 : f32 to vector<8x128xf32>
    %87 = arith.mulf %5, %86 : vector<8x128xf32>
    %88 = arith.addf %84, %87 : vector<8x128xf32>
    %c3_51 = arith.constant 3 : index
    %c2_52 = arith.constant 2 : index
    %89 = memref.load %arg2[%c3_51, %c2_52] : memref<7x10xf32, #tpu.memory_space<smem>>
    %90 = vector.broadcast %89 : f32 to vector<8x128xf32>
    %91 = arith.mulf %7, %90 : vector<8x128xf32>
    %92 = arith.addf %88, %91 : vector<8x128xf32>
    %c4_53 = arith.constant 4 : index
    %c2_54 = arith.constant 2 : index
    %93 = memref.load %arg2[%c4_53, %c2_54] : memref<7x10xf32, #tpu.memory_space<smem>>
    %94 = vector.broadcast %93 : f32 to vector<8x128xf32>
    %95 = arith.mulf %9, %94 : vector<8x128xf32>
    %96 = arith.addf %92, %95 : vector<8x128xf32>
    %c5_55 = arith.constant 5 : index
    %c2_56 = arith.constant 2 : index
    %97 = memref.load %arg2[%c5_55, %c2_56] : memref<7x10xf32, #tpu.memory_space<smem>>
    %98 = vector.broadcast %97 : f32 to vector<8x128xf32>
    %99 = arith.mulf %11, %98 : vector<8x128xf32>
    %100 = arith.addf %96, %99 : vector<8x128xf32>
    %c6_57 = arith.constant 6 : index
    %c2_58 = arith.constant 2 : index
    %101 = memref.load %arg2[%c6_57, %c2_58] : memref<7x10xf32, #tpu.memory_space<smem>>
    %102 = vector.broadcast %101 : f32 to vector<8x128xf32>
    %103 = arith.mulf %13, %102 : vector<8x128xf32>
    %104 = arith.addf %100, %103 : vector<8x128xf32>
    %c2_59 = arith.constant 2 : index
    %105 = memref.load %arg3[%c2_59] : memref<10xf32, #tpu.memory_space<smem>>
    %106 = vector.broadcast %105 : f32 to vector<8x128xf32>
    %107 = arith.addf %104, %106 : vector<8x128xf32>
    %cst_60 = arith.constant 0.000000e+00 : f32
    %108 = vector.broadcast %cst_60 : f32 to vector<8x128xf32>
    %109 = arith.maximumf %107, %108 : vector<8x128xf32>
    %c0_61 = arith.constant 0 : index
    %c3_62 = arith.constant 3 : index
    %110 = memref.load %arg2[%c0_61, %c3_62] : memref<7x10xf32, #tpu.memory_space<smem>>
    %111 = vector.broadcast %110 : f32 to vector<8x128xf32>
    %112 = arith.mulf %1, %111 : vector<8x128xf32>
    %c1_63 = arith.constant 1 : index
    %c3_64 = arith.constant 3 : index
    %113 = memref.load %arg2[%c1_63, %c3_64] : memref<7x10xf32, #tpu.memory_space<smem>>
    %114 = vector.broadcast %113 : f32 to vector<8x128xf32>
    %115 = arith.mulf %3, %114 : vector<8x128xf32>
    %116 = arith.addf %112, %115 : vector<8x128xf32>
    %c2_65 = arith.constant 2 : index
    %c3_66 = arith.constant 3 : index
    %117 = memref.load %arg2[%c2_65, %c3_66] : memref<7x10xf32, #tpu.memory_space<smem>>
    %118 = vector.broadcast %117 : f32 to vector<8x128xf32>
    %119 = arith.mulf %5, %118 : vector<8x128xf32>
    %120 = arith.addf %116, %119 : vector<8x128xf32>
    %c3_67 = arith.constant 3 : index
    %c3_68 = arith.constant 3 : index
    %121 = memref.load %arg2[%c3_67, %c3_68] : memref<7x10xf32, #tpu.memory_space<smem>>
    %122 = vector.broadcast %121 : f32 to vector<8x128xf32>
    %123 = arith.mulf %7, %122 : vector<8x128xf32>
    %124 = arith.addf %120, %123 : vector<8x128xf32>
    %c4_69 = arith.constant 4 : index
    %c3_70 = arith.constant 3 : index
    %125 = memref.load %arg2[%c4_69, %c3_70] : memref<7x10xf32, #tpu.memory_space<smem>>
    %126 = vector.broadcast %125 : f32 to vector<8x128xf32>
    %127 = arith.mulf %9, %126 : vector<8x128xf32>
    %128 = arith.addf %124, %127 : vector<8x128xf32>
    %c5_71 = arith.constant 5 : index
    %c3_72 = arith.constant 3 : index
    %129 = memref.load %arg2[%c5_71, %c3_72] : memref<7x10xf32, #tpu.memory_space<smem>>
    %130 = vector.broadcast %129 : f32 to vector<8x128xf32>
    %131 = arith.mulf %11, %130 : vector<8x128xf32>
    %132 = arith.addf %128, %131 : vector<8x128xf32>
    %c6_73 = arith.constant 6 : index
    %c3_74 = arith.constant 3 : index
    %133 = memref.load %arg2[%c6_73, %c3_74] : memref<7x10xf32, #tpu.memory_space<smem>>
    %134 = vector.broadcast %133 : f32 to vector<8x128xf32>
    %135 = arith.mulf %13, %134 : vector<8x128xf32>
    %136 = arith.addf %132, %135 : vector<8x128xf32>
    %c3_75 = arith.constant 3 : index
    %137 = memref.load %arg3[%c3_75] : memref<10xf32, #tpu.memory_space<smem>>
    %138 = vector.broadcast %137 : f32 to vector<8x128xf32>
    %139 = arith.addf %136, %138 : vector<8x128xf32>
    %cst_76 = arith.constant 0.000000e+00 : f32
    %140 = vector.broadcast %cst_76 : f32 to vector<8x128xf32>
    %141 = arith.maximumf %139, %140 : vector<8x128xf32>
    %c0_77 = arith.constant 0 : index
    %c4_78 = arith.constant 4 : index
    %142 = memref.load %arg2[%c0_77, %c4_78] : memref<7x10xf32, #tpu.memory_space<smem>>
    %143 = vector.broadcast %142 : f32 to vector<8x128xf32>
    %144 = arith.mulf %1, %143 : vector<8x128xf32>
    %c1_79 = arith.constant 1 : index
    %c4_80 = arith.constant 4 : index
    %145 = memref.load %arg2[%c1_79, %c4_80] : memref<7x10xf32, #tpu.memory_space<smem>>
    %146 = vector.broadcast %145 : f32 to vector<8x128xf32>
    %147 = arith.mulf %3, %146 : vector<8x128xf32>
    %148 = arith.addf %144, %147 : vector<8x128xf32>
    %c2_81 = arith.constant 2 : index
    %c4_82 = arith.constant 4 : index
    %149 = memref.load %arg2[%c2_81, %c4_82] : memref<7x10xf32, #tpu.memory_space<smem>>
    %150 = vector.broadcast %149 : f32 to vector<8x128xf32>
    %151 = arith.mulf %5, %150 : vector<8x128xf32>
    %152 = arith.addf %148, %151 : vector<8x128xf32>
    %c3_83 = arith.constant 3 : index
    %c4_84 = arith.constant 4 : index
    %153 = memref.load %arg2[%c3_83, %c4_84] : memref<7x10xf32, #tpu.memory_space<smem>>
    %154 = vector.broadcast %153 : f32 to vector<8x128xf32>
    %155 = arith.mulf %7, %154 : vector<8x128xf32>
    %156 = arith.addf %152, %155 : vector<8x128xf32>
    %c4_85 = arith.constant 4 : index
    %c4_86 = arith.constant 4 : index
    %157 = memref.load %arg2[%c4_85, %c4_86] : memref<7x10xf32, #tpu.memory_space<smem>>
    %158 = vector.broadcast %157 : f32 to vector<8x128xf32>
    %159 = arith.mulf %9, %158 : vector<8x128xf32>
    %160 = arith.addf %156, %159 : vector<8x128xf32>
    %c5_87 = arith.constant 5 : index
    %c4_88 = arith.constant 4 : index
    %161 = memref.load %arg2[%c5_87, %c4_88] : memref<7x10xf32, #tpu.memory_space<smem>>
    %162 = vector.broadcast %161 : f32 to vector<8x128xf32>
    %163 = arith.mulf %11, %162 : vector<8x128xf32>
    %164 = arith.addf %160, %163 : vector<8x128xf32>
    %c6_89 = arith.constant 6 : index
    %c4_90 = arith.constant 4 : index
    %165 = memref.load %arg2[%c6_89, %c4_90] : memref<7x10xf32, #tpu.memory_space<smem>>
    %166 = vector.broadcast %165 : f32 to vector<8x128xf32>
    %167 = arith.mulf %13, %166 : vector<8x128xf32>
    %168 = arith.addf %164, %167 : vector<8x128xf32>
    %c4_91 = arith.constant 4 : index
    %169 = memref.load %arg3[%c4_91] : memref<10xf32, #tpu.memory_space<smem>>
    %170 = vector.broadcast %169 : f32 to vector<8x128xf32>
    %171 = arith.addf %168, %170 : vector<8x128xf32>
    %cst_92 = arith.constant 0.000000e+00 : f32
    %172 = vector.broadcast %cst_92 : f32 to vector<8x128xf32>
    %173 = arith.maximumf %171, %172 : vector<8x128xf32>
    %c0_93 = arith.constant 0 : index
    %c5_94 = arith.constant 5 : index
    %174 = memref.load %arg2[%c0_93, %c5_94] : memref<7x10xf32, #tpu.memory_space<smem>>
    %175 = vector.broadcast %174 : f32 to vector<8x128xf32>
    %176 = arith.mulf %1, %175 : vector<8x128xf32>
    %c1_95 = arith.constant 1 : index
    %c5_96 = arith.constant 5 : index
    %177 = memref.load %arg2[%c1_95, %c5_96] : memref<7x10xf32, #tpu.memory_space<smem>>
    %178 = vector.broadcast %177 : f32 to vector<8x128xf32>
    %179 = arith.mulf %3, %178 : vector<8x128xf32>
    %180 = arith.addf %176, %179 : vector<8x128xf32>
    %c2_97 = arith.constant 2 : index
    %c5_98 = arith.constant 5 : index
    %181 = memref.load %arg2[%c2_97, %c5_98] : memref<7x10xf32, #tpu.memory_space<smem>>
    %182 = vector.broadcast %181 : f32 to vector<8x128xf32>
    %183 = arith.mulf %5, %182 : vector<8x128xf32>
    %184 = arith.addf %180, %183 : vector<8x128xf32>
    %c3_99 = arith.constant 3 : index
    %c5_100 = arith.constant 5 : index
    %185 = memref.load %arg2[%c3_99, %c5_100] : memref<7x10xf32, #tpu.memory_space<smem>>
    %186 = vector.broadcast %185 : f32 to vector<8x128xf32>
    %187 = arith.mulf %7, %186 : vector<8x128xf32>
    %188 = arith.addf %184, %187 : vector<8x128xf32>
    %c4_101 = arith.constant 4 : index
    %c5_102 = arith.constant 5 : index
    %189 = memref.load %arg2[%c4_101, %c5_102] : memref<7x10xf32, #tpu.memory_space<smem>>
    %190 = vector.broadcast %189 : f32 to vector<8x128xf32>
    %191 = arith.mulf %9, %190 : vector<8x128xf32>
    %192 = arith.addf %188, %191 : vector<8x128xf32>
    %c5_103 = arith.constant 5 : index
    %c5_104 = arith.constant 5 : index
    %193 = memref.load %arg2[%c5_103, %c5_104] : memref<7x10xf32, #tpu.memory_space<smem>>
    %194 = vector.broadcast %193 : f32 to vector<8x128xf32>
    %195 = arith.mulf %11, %194 : vector<8x128xf32>
    %196 = arith.addf %192, %195 : vector<8x128xf32>
    %c6_105 = arith.constant 6 : index
    %c5_106 = arith.constant 5 : index
    %197 = memref.load %arg2[%c6_105, %c5_106] : memref<7x10xf32, #tpu.memory_space<smem>>
    %198 = vector.broadcast %197 : f32 to vector<8x128xf32>
    %199 = arith.mulf %13, %198 : vector<8x128xf32>
    %200 = arith.addf %196, %199 : vector<8x128xf32>
    %c5_107 = arith.constant 5 : index
    %201 = memref.load %arg3[%c5_107] : memref<10xf32, #tpu.memory_space<smem>>
    %202 = vector.broadcast %201 : f32 to vector<8x128xf32>
    %203 = arith.addf %200, %202 : vector<8x128xf32>
    %cst_108 = arith.constant 0.000000e+00 : f32
    %204 = vector.broadcast %cst_108 : f32 to vector<8x128xf32>
    %205 = arith.maximumf %203, %204 : vector<8x128xf32>
    %c0_109 = arith.constant 0 : index
    %c6_110 = arith.constant 6 : index
    %206 = memref.load %arg2[%c0_109, %c6_110] : memref<7x10xf32, #tpu.memory_space<smem>>
    %207 = vector.broadcast %206 : f32 to vector<8x128xf32>
    %208 = arith.mulf %1, %207 : vector<8x128xf32>
    %c1_111 = arith.constant 1 : index
    %c6_112 = arith.constant 6 : index
    %209 = memref.load %arg2[%c1_111, %c6_112] : memref<7x10xf32, #tpu.memory_space<smem>>
    %210 = vector.broadcast %209 : f32 to vector<8x128xf32>
    %211 = arith.mulf %3, %210 : vector<8x128xf32>
    %212 = arith.addf %208, %211 : vector<8x128xf32>
    %c2_113 = arith.constant 2 : index
    %c6_114 = arith.constant 6 : index
    %213 = memref.load %arg2[%c2_113, %c6_114] : memref<7x10xf32, #tpu.memory_space<smem>>
    %214 = vector.broadcast %213 : f32 to vector<8x128xf32>
    %215 = arith.mulf %5, %214 : vector<8x128xf32>
    %216 = arith.addf %212, %215 : vector<8x128xf32>
    %c3_115 = arith.constant 3 : index
    %c6_116 = arith.constant 6 : index
    %217 = memref.load %arg2[%c3_115, %c6_116] : memref<7x10xf32, #tpu.memory_space<smem>>
    %218 = vector.broadcast %217 : f32 to vector<8x128xf32>
    %219 = arith.mulf %7, %218 : vector<8x128xf32>
    %220 = arith.addf %216, %219 : vector<8x128xf32>
    %c4_117 = arith.constant 4 : index
    %c6_118 = arith.constant 6 : index
    %221 = memref.load %arg2[%c4_117, %c6_118] : memref<7x10xf32, #tpu.memory_space<smem>>
    %222 = vector.broadcast %221 : f32 to vector<8x128xf32>
    %223 = arith.mulf %9, %222 : vector<8x128xf32>
    %224 = arith.addf %220, %223 : vector<8x128xf32>
    %c5_119 = arith.constant 5 : index
    %c6_120 = arith.constant 6 : index
    %225 = memref.load %arg2[%c5_119, %c6_120] : memref<7x10xf32, #tpu.memory_space<smem>>
    %226 = vector.broadcast %225 : f32 to vector<8x128xf32>
    %227 = arith.mulf %11, %226 : vector<8x128xf32>
    %228 = arith.addf %224, %227 : vector<8x128xf32>
    %c6_121 = arith.constant 6 : index
    %c6_122 = arith.constant 6 : index
    %229 = memref.load %arg2[%c6_121, %c6_122] : memref<7x10xf32, #tpu.memory_space<smem>>
    %230 = vector.broadcast %229 : f32 to vector<8x128xf32>
    %231 = arith.mulf %13, %230 : vector<8x128xf32>
    %232 = arith.addf %228, %231 : vector<8x128xf32>
    %c6_123 = arith.constant 6 : index
    %233 = memref.load %arg3[%c6_123] : memref<10xf32, #tpu.memory_space<smem>>
    %234 = vector.broadcast %233 : f32 to vector<8x128xf32>
    %235 = arith.addf %232, %234 : vector<8x128xf32>
    %cst_124 = arith.constant 0.000000e+00 : f32
    %236 = vector.broadcast %cst_124 : f32 to vector<8x128xf32>
    %237 = arith.maximumf %235, %236 : vector<8x128xf32>
    %c0_125 = arith.constant 0 : index
    %c7 = arith.constant 7 : index
    %238 = memref.load %arg2[%c0_125, %c7] : memref<7x10xf32, #tpu.memory_space<smem>>
    %239 = vector.broadcast %238 : f32 to vector<8x128xf32>
    %240 = arith.mulf %1, %239 : vector<8x128xf32>
    %c1_126 = arith.constant 1 : index
    %c7_127 = arith.constant 7 : index
    %241 = memref.load %arg2[%c1_126, %c7_127] : memref<7x10xf32, #tpu.memory_space<smem>>
    %242 = vector.broadcast %241 : f32 to vector<8x128xf32>
    %243 = arith.mulf %3, %242 : vector<8x128xf32>
    %244 = arith.addf %240, %243 : vector<8x128xf32>
    %c2_128 = arith.constant 2 : index
    %c7_129 = arith.constant 7 : index
    %245 = memref.load %arg2[%c2_128, %c7_129] : memref<7x10xf32, #tpu.memory_space<smem>>
    %246 = vector.broadcast %245 : f32 to vector<8x128xf32>
    %247 = arith.mulf %5, %246 : vector<8x128xf32>
    %248 = arith.addf %244, %247 : vector<8x128xf32>
    %c3_130 = arith.constant 3 : index
    %c7_131 = arith.constant 7 : index
    %249 = memref.load %arg2[%c3_130, %c7_131] : memref<7x10xf32, #tpu.memory_space<smem>>
    %250 = vector.broadcast %249 : f32 to vector<8x128xf32>
    %251 = arith.mulf %7, %250 : vector<8x128xf32>
    %252 = arith.addf %248, %251 : vector<8x128xf32>
    %c4_132 = arith.constant 4 : index
    %c7_133 = arith.constant 7 : index
    %253 = memref.load %arg2[%c4_132, %c7_133] : memref<7x10xf32, #tpu.memory_space<smem>>
    %254 = vector.broadcast %253 : f32 to vector<8x128xf32>
    %255 = arith.mulf %9, %254 : vector<8x128xf32>
    %256 = arith.addf %252, %255 : vector<8x128xf32>
    %c5_134 = arith.constant 5 : index
    %c7_135 = arith.constant 7 : index
    %257 = memref.load %arg2[%c5_134, %c7_135] : memref<7x10xf32, #tpu.memory_space<smem>>
    %258 = vector.broadcast %257 : f32 to vector<8x128xf32>
    %259 = arith.mulf %11, %258 : vector<8x128xf32>
    %260 = arith.addf %256, %259 : vector<8x128xf32>
    %c6_136 = arith.constant 6 : index
    %c7_137 = arith.constant 7 : index
    %261 = memref.load %arg2[%c6_136, %c7_137] : memref<7x10xf32, #tpu.memory_space<smem>>
    %262 = vector.broadcast %261 : f32 to vector<8x128xf32>
    %263 = arith.mulf %13, %262 : vector<8x128xf32>
    %264 = arith.addf %260, %263 : vector<8x128xf32>
    %c7_138 = arith.constant 7 : index
    %265 = memref.load %arg3[%c7_138] : memref<10xf32, #tpu.memory_space<smem>>
    %266 = vector.broadcast %265 : f32 to vector<8x128xf32>
    %267 = arith.addf %264, %266 : vector<8x128xf32>
    %cst_139 = arith.constant 0.000000e+00 : f32
    %268 = vector.broadcast %cst_139 : f32 to vector<8x128xf32>
    %269 = arith.maximumf %267, %268 : vector<8x128xf32>
    %c0_140 = arith.constant 0 : index
    %c8 = arith.constant 8 : index
    %270 = memref.load %arg2[%c0_140, %c8] : memref<7x10xf32, #tpu.memory_space<smem>>
    %271 = vector.broadcast %270 : f32 to vector<8x128xf32>
    %272 = arith.mulf %1, %271 : vector<8x128xf32>
    %c1_141 = arith.constant 1 : index
    %c8_142 = arith.constant 8 : index
    %273 = memref.load %arg2[%c1_141, %c8_142] : memref<7x10xf32, #tpu.memory_space<smem>>
    %274 = vector.broadcast %273 : f32 to vector<8x128xf32>
    %275 = arith.mulf %3, %274 : vector<8x128xf32>
    %276 = arith.addf %272, %275 : vector<8x128xf32>
    %c2_143 = arith.constant 2 : index
    %c8_144 = arith.constant 8 : index
    %277 = memref.load %arg2[%c2_143, %c8_144] : memref<7x10xf32, #tpu.memory_space<smem>>
    %278 = vector.broadcast %277 : f32 to vector<8x128xf32>
    %279 = arith.mulf %5, %278 : vector<8x128xf32>
    %280 = arith.addf %276, %279 : vector<8x128xf32>
    %c3_145 = arith.constant 3 : index
    %c8_146 = arith.constant 8 : index
    %281 = memref.load %arg2[%c3_145, %c8_146] : memref<7x10xf32, #tpu.memory_space<smem>>
    %282 = vector.broadcast %281 : f32 to vector<8x128xf32>
    %283 = arith.mulf %7, %282 : vector<8x128xf32>
    %284 = arith.addf %280, %283 : vector<8x128xf32>
    %c4_147 = arith.constant 4 : index
    %c8_148 = arith.constant 8 : index
    %285 = memref.load %arg2[%c4_147, %c8_148] : memref<7x10xf32, #tpu.memory_space<smem>>
    %286 = vector.broadcast %285 : f32 to vector<8x128xf32>
    %287 = arith.mulf %9, %286 : vector<8x128xf32>
    %288 = arith.addf %284, %287 : vector<8x128xf32>
    %c5_149 = arith.constant 5 : index
    %c8_150 = arith.constant 8 : index
    %289 = memref.load %arg2[%c5_149, %c8_150] : memref<7x10xf32, #tpu.memory_space<smem>>
    %290 = vector.broadcast %289 : f32 to vector<8x128xf32>
    %291 = arith.mulf %11, %290 : vector<8x128xf32>
    %292 = arith.addf %288, %291 : vector<8x128xf32>
    %c6_151 = arith.constant 6 : index
    %c8_152 = arith.constant 8 : index
    %293 = memref.load %arg2[%c6_151, %c8_152] : memref<7x10xf32, #tpu.memory_space<smem>>
    %294 = vector.broadcast %293 : f32 to vector<8x128xf32>
    %295 = arith.mulf %13, %294 : vector<8x128xf32>
    %296 = arith.addf %292, %295 : vector<8x128xf32>
    %c8_153 = arith.constant 8 : index
    %297 = memref.load %arg3[%c8_153] : memref<10xf32, #tpu.memory_space<smem>>
    %298 = vector.broadcast %297 : f32 to vector<8x128xf32>
    %299 = arith.addf %296, %298 : vector<8x128xf32>
    %cst_154 = arith.constant 0.000000e+00 : f32
    %300 = vector.broadcast %cst_154 : f32 to vector<8x128xf32>
    %301 = arith.maximumf %299, %300 : vector<8x128xf32>
    %c0_155 = arith.constant 0 : index
    %c9 = arith.constant 9 : index
    %302 = memref.load %arg2[%c0_155, %c9] : memref<7x10xf32, #tpu.memory_space<smem>>
    %303 = vector.broadcast %302 : f32 to vector<8x128xf32>
    %304 = arith.mulf %1, %303 : vector<8x128xf32>
    %c1_156 = arith.constant 1 : index
    %c9_157 = arith.constant 9 : index
    %305 = memref.load %arg2[%c1_156, %c9_157] : memref<7x10xf32, #tpu.memory_space<smem>>
    %306 = vector.broadcast %305 : f32 to vector<8x128xf32>
    %307 = arith.mulf %3, %306 : vector<8x128xf32>
    %308 = arith.addf %304, %307 : vector<8x128xf32>
    %c2_158 = arith.constant 2 : index
    %c9_159 = arith.constant 9 : index
    %309 = memref.load %arg2[%c2_158, %c9_159] : memref<7x10xf32, #tpu.memory_space<smem>>
    %310 = vector.broadcast %309 : f32 to vector<8x128xf32>
    %311 = arith.mulf %5, %310 : vector<8x128xf32>
    %312 = arith.addf %308, %311 : vector<8x128xf32>
    %c3_160 = arith.constant 3 : index
    %c9_161 = arith.constant 9 : index
    %313 = memref.load %arg2[%c3_160, %c9_161] : memref<7x10xf32, #tpu.memory_space<smem>>
    %314 = vector.broadcast %313 : f32 to vector<8x128xf32>
    %315 = arith.mulf %7, %314 : vector<8x128xf32>
    %316 = arith.addf %312, %315 : vector<8x128xf32>
    %c4_162 = arith.constant 4 : index
    %c9_163 = arith.constant 9 : index
    %317 = memref.load %arg2[%c4_162, %c9_163] : memref<7x10xf32, #tpu.memory_space<smem>>
    %318 = vector.broadcast %317 : f32 to vector<8x128xf32>
    %319 = arith.mulf %9, %318 : vector<8x128xf32>
    %320 = arith.addf %316, %319 : vector<8x128xf32>
    %c5_164 = arith.constant 5 : index
    %c9_165 = arith.constant 9 : index
    %321 = memref.load %arg2[%c5_164, %c9_165] : memref<7x10xf32, #tpu.memory_space<smem>>
    %322 = vector.broadcast %321 : f32 to vector<8x128xf32>
    %323 = arith.mulf %11, %322 : vector<8x128xf32>
    %324 = arith.addf %320, %323 : vector<8x128xf32>
    %c6_166 = arith.constant 6 : index
    %c9_167 = arith.constant 9 : index
    %325 = memref.load %arg2[%c6_166, %c9_167] : memref<7x10xf32, #tpu.memory_space<smem>>
    %326 = vector.broadcast %325 : f32 to vector<8x128xf32>
    %327 = arith.mulf %13, %326 : vector<8x128xf32>
    %328 = arith.addf %324, %327 : vector<8x128xf32>
    %c9_168 = arith.constant 9 : index
    %329 = memref.load %arg3[%c9_168] : memref<10xf32, #tpu.memory_space<smem>>
    %330 = vector.broadcast %329 : f32 to vector<8x128xf32>
    %331 = arith.addf %328, %330 : vector<8x128xf32>
    %cst_169 = arith.constant 0.000000e+00 : f32
    %332 = vector.broadcast %cst_169 : f32 to vector<8x128xf32>
    %333 = arith.maximumf %331, %332 : vector<8x128xf32>
    %c0_170 = arith.constant 0 : index
    %c0_171 = arith.constant 0 : index
    %334 = memref.load %arg4[%c0_170, %c0_171] : memref<10x5xf32, #tpu.memory_space<smem>>
    %335 = vector.broadcast %334 : f32 to vector<8x128xf32>
    %336 = arith.mulf %45, %335 : vector<8x128xf32>
    %c1_172 = arith.constant 1 : index
    %c0_173 = arith.constant 0 : index
    %337 = memref.load %arg4[%c1_172, %c0_173] : memref<10x5xf32, #tpu.memory_space<smem>>
    %338 = vector.broadcast %337 : f32 to vector<8x128xf32>
    %339 = arith.mulf %77, %338 : vector<8x128xf32>
    %340 = arith.addf %336, %339 : vector<8x128xf32>
    %c2_174 = arith.constant 2 : index
    %c0_175 = arith.constant 0 : index
    %341 = memref.load %arg4[%c2_174, %c0_175] : memref<10x5xf32, #tpu.memory_space<smem>>
    %342 = vector.broadcast %341 : f32 to vector<8x128xf32>
    %343 = arith.mulf %109, %342 : vector<8x128xf32>
    %344 = arith.addf %340, %343 : vector<8x128xf32>
    %c3_176 = arith.constant 3 : index
    %c0_177 = arith.constant 0 : index
    %345 = memref.load %arg4[%c3_176, %c0_177] : memref<10x5xf32, #tpu.memory_space<smem>>
    %346 = vector.broadcast %345 : f32 to vector<8x128xf32>
    %347 = arith.mulf %141, %346 : vector<8x128xf32>
    %348 = arith.addf %344, %347 : vector<8x128xf32>
    %c4_178 = arith.constant 4 : index
    %c0_179 = arith.constant 0 : index
    %349 = memref.load %arg4[%c4_178, %c0_179] : memref<10x5xf32, #tpu.memory_space<smem>>
    %350 = vector.broadcast %349 : f32 to vector<8x128xf32>
    %351 = arith.mulf %173, %350 : vector<8x128xf32>
    %352 = arith.addf %348, %351 : vector<8x128xf32>
    %c5_180 = arith.constant 5 : index
    %c0_181 = arith.constant 0 : index
    %353 = memref.load %arg4[%c5_180, %c0_181] : memref<10x5xf32, #tpu.memory_space<smem>>
    %354 = vector.broadcast %353 : f32 to vector<8x128xf32>
    %355 = arith.mulf %205, %354 : vector<8x128xf32>
    %356 = arith.addf %352, %355 : vector<8x128xf32>
    %c6_182 = arith.constant 6 : index
    %c0_183 = arith.constant 0 : index
    %357 = memref.load %arg4[%c6_182, %c0_183] : memref<10x5xf32, #tpu.memory_space<smem>>
    %358 = vector.broadcast %357 : f32 to vector<8x128xf32>
    %359 = arith.mulf %237, %358 : vector<8x128xf32>
    %360 = arith.addf %356, %359 : vector<8x128xf32>
    %c7_184 = arith.constant 7 : index
    %c0_185 = arith.constant 0 : index
    %361 = memref.load %arg4[%c7_184, %c0_185] : memref<10x5xf32, #tpu.memory_space<smem>>
    %362 = vector.broadcast %361 : f32 to vector<8x128xf32>
    %363 = arith.mulf %269, %362 : vector<8x128xf32>
    %364 = arith.addf %360, %363 : vector<8x128xf32>
    %c8_186 = arith.constant 8 : index
    %c0_187 = arith.constant 0 : index
    %365 = memref.load %arg4[%c8_186, %c0_187] : memref<10x5xf32, #tpu.memory_space<smem>>
    %366 = vector.broadcast %365 : f32 to vector<8x128xf32>
    %367 = arith.mulf %301, %366 : vector<8x128xf32>
    %368 = arith.addf %364, %367 : vector<8x128xf32>
    %c9_188 = arith.constant 9 : index
    %c0_189 = arith.constant 0 : index
    %369 = memref.load %arg4[%c9_188, %c0_189] : memref<10x5xf32, #tpu.memory_space<smem>>
    %370 = vector.broadcast %369 : f32 to vector<8x128xf32>
    %371 = arith.mulf %333, %370 : vector<8x128xf32>
    %372 = arith.addf %368, %371 : vector<8x128xf32>
    %c0_190 = arith.constant 0 : index
    %373 = memref.load %arg5[%c0_190] : memref<5xf32, #tpu.memory_space<smem>>
    %374 = vector.broadcast %373 : f32 to vector<8x128xf32>
    %375 = arith.addf %372, %374 : vector<8x128xf32>
    %cst_191 = arith.constant 0.000000e+00 : f32
    %376 = vector.broadcast %cst_191 : f32 to vector<8x128xf32>
    %377 = arith.maximumf %375, %376 : vector<8x128xf32>
    %c0_192 = arith.constant 0 : index
    %c1_193 = arith.constant 1 : index
    %378 = memref.load %arg4[%c0_192, %c1_193] : memref<10x5xf32, #tpu.memory_space<smem>>
    %379 = vector.broadcast %378 : f32 to vector<8x128xf32>
    %380 = arith.mulf %45, %379 : vector<8x128xf32>
    %c1_194 = arith.constant 1 : index
    %c1_195 = arith.constant 1 : index
    %381 = memref.load %arg4[%c1_194, %c1_195] : memref<10x5xf32, #tpu.memory_space<smem>>
    %382 = vector.broadcast %381 : f32 to vector<8x128xf32>
    %383 = arith.mulf %77, %382 : vector<8x128xf32>
    %384 = arith.addf %380, %383 : vector<8x128xf32>
    %c2_196 = arith.constant 2 : index
    %c1_197 = arith.constant 1 : index
    %385 = memref.load %arg4[%c2_196, %c1_197] : memref<10x5xf32, #tpu.memory_space<smem>>
    %386 = vector.broadcast %385 : f32 to vector<8x128xf32>
    %387 = arith.mulf %109, %386 : vector<8x128xf32>
    %388 = arith.addf %384, %387 : vector<8x128xf32>
    %c3_198 = arith.constant 3 : index
    %c1_199 = arith.constant 1 : index
    %389 = memref.load %arg4[%c3_198, %c1_199] : memref<10x5xf32, #tpu.memory_space<smem>>
    %390 = vector.broadcast %389 : f32 to vector<8x128xf32>
    %391 = arith.mulf %141, %390 : vector<8x128xf32>
    %392 = arith.addf %388, %391 : vector<8x128xf32>
    %c4_200 = arith.constant 4 : index
    %c1_201 = arith.constant 1 : index
    %393 = memref.load %arg4[%c4_200, %c1_201] : memref<10x5xf32, #tpu.memory_space<smem>>
    %394 = vector.broadcast %393 : f32 to vector<8x128xf32>
    %395 = arith.mulf %173, %394 : vector<8x128xf32>
    %396 = arith.addf %392, %395 : vector<8x128xf32>
    %c5_202 = arith.constant 5 : index
    %c1_203 = arith.constant 1 : index
    %397 = memref.load %arg4[%c5_202, %c1_203] : memref<10x5xf32, #tpu.memory_space<smem>>
    %398 = vector.broadcast %397 : f32 to vector<8x128xf32>
    %399 = arith.mulf %205, %398 : vector<8x128xf32>
    %400 = arith.addf %396, %399 : vector<8x128xf32>
    %c6_204 = arith.constant 6 : index
    %c1_205 = arith.constant 1 : index
    %401 = memref.load %arg4[%c6_204, %c1_205] : memref<10x5xf32, #tpu.memory_space<smem>>
    %402 = vector.broadcast %401 : f32 to vector<8x128xf32>
    %403 = arith.mulf %237, %402 : vector<8x128xf32>
    %404 = arith.addf %400, %403 : vector<8x128xf32>
    %c7_206 = arith.constant 7 : index
    %c1_207 = arith.constant 1 : index
    %405 = memref.load %arg4[%c7_206, %c1_207] : memref<10x5xf32, #tpu.memory_space<smem>>
    %406 = vector.broadcast %405 : f32 to vector<8x128xf32>
    %407 = arith.mulf %269, %406 : vector<8x128xf32>
    %408 = arith.addf %404, %407 : vector<8x128xf32>
    %c8_208 = arith.constant 8 : index
    %c1_209 = arith.constant 1 : index
    %409 = memref.load %arg4[%c8_208, %c1_209] : memref<10x5xf32, #tpu.memory_space<smem>>
    %410 = vector.broadcast %409 : f32 to vector<8x128xf32>
    %411 = arith.mulf %301, %410 : vector<8x128xf32>
    %412 = arith.addf %408, %411 : vector<8x128xf32>
    %c9_210 = arith.constant 9 : index
    %c1_211 = arith.constant 1 : index
    %413 = memref.load %arg4[%c9_210, %c1_211] : memref<10x5xf32, #tpu.memory_space<smem>>
    %414 = vector.broadcast %413 : f32 to vector<8x128xf32>
    %415 = arith.mulf %333, %414 : vector<8x128xf32>
    %416 = arith.addf %412, %415 : vector<8x128xf32>
    %c1_212 = arith.constant 1 : index
    %417 = memref.load %arg5[%c1_212] : memref<5xf32, #tpu.memory_space<smem>>
    %418 = vector.broadcast %417 : f32 to vector<8x128xf32>
    %419 = arith.addf %416, %418 : vector<8x128xf32>
    %cst_213 = arith.constant 0.000000e+00 : f32
    %420 = vector.broadcast %cst_213 : f32 to vector<8x128xf32>
    %421 = arith.maximumf %419, %420 : vector<8x128xf32>
    %c0_214 = arith.constant 0 : index
    %c2_215 = arith.constant 2 : index
    %422 = memref.load %arg4[%c0_214, %c2_215] : memref<10x5xf32, #tpu.memory_space<smem>>
    %423 = vector.broadcast %422 : f32 to vector<8x128xf32>
    %424 = arith.mulf %45, %423 : vector<8x128xf32>
    %c1_216 = arith.constant 1 : index
    %c2_217 = arith.constant 2 : index
    %425 = memref.load %arg4[%c1_216, %c2_217] : memref<10x5xf32, #tpu.memory_space<smem>>
    %426 = vector.broadcast %425 : f32 to vector<8x128xf32>
    %427 = arith.mulf %77, %426 : vector<8x128xf32>
    %428 = arith.addf %424, %427 : vector<8x128xf32>
    %c2_218 = arith.constant 2 : index
    %c2_219 = arith.constant 2 : index
    %429 = memref.load %arg4[%c2_218, %c2_219] : memref<10x5xf32, #tpu.memory_space<smem>>
    %430 = vector.broadcast %429 : f32 to vector<8x128xf32>
    %431 = arith.mulf %109, %430 : vector<8x128xf32>
    %432 = arith.addf %428, %431 : vector<8x128xf32>
    %c3_220 = arith.constant 3 : index
    %c2_221 = arith.constant 2 : index
    %433 = memref.load %arg4[%c3_220, %c2_221] : memref<10x5xf32, #tpu.memory_space<smem>>
    %434 = vector.broadcast %433 : f32 to vector<8x128xf32>
    %435 = arith.mulf %141, %434 : vector<8x128xf32>
    %436 = arith.addf %432, %435 : vector<8x128xf32>
    %c4_222 = arith.constant 4 : index
    %c2_223 = arith.constant 2 : index
    %437 = memref.load %arg4[%c4_222, %c2_223] : memref<10x5xf32, #tpu.memory_space<smem>>
    %438 = vector.broadcast %437 : f32 to vector<8x128xf32>
    %439 = arith.mulf %173, %438 : vector<8x128xf32>
    %440 = arith.addf %436, %439 : vector<8x128xf32>
    %c5_224 = arith.constant 5 : index
    %c2_225 = arith.constant 2 : index
    %441 = memref.load %arg4[%c5_224, %c2_225] : memref<10x5xf32, #tpu.memory_space<smem>>
    %442 = vector.broadcast %441 : f32 to vector<8x128xf32>
    %443 = arith.mulf %205, %442 : vector<8x128xf32>
    %444 = arith.addf %440, %443 : vector<8x128xf32>
    %c6_226 = arith.constant 6 : index
    %c2_227 = arith.constant 2 : index
    %445 = memref.load %arg4[%c6_226, %c2_227] : memref<10x5xf32, #tpu.memory_space<smem>>
    %446 = vector.broadcast %445 : f32 to vector<8x128xf32>
    %447 = arith.mulf %237, %446 : vector<8x128xf32>
    %448 = arith.addf %444, %447 : vector<8x128xf32>
    %c7_228 = arith.constant 7 : index
    %c2_229 = arith.constant 2 : index
    %449 = memref.load %arg4[%c7_228, %c2_229] : memref<10x5xf32, #tpu.memory_space<smem>>
    %450 = vector.broadcast %449 : f32 to vector<8x128xf32>
    %451 = arith.mulf %269, %450 : vector<8x128xf32>
    %452 = arith.addf %448, %451 : vector<8x128xf32>
    %c8_230 = arith.constant 8 : index
    %c2_231 = arith.constant 2 : index
    %453 = memref.load %arg4[%c8_230, %c2_231] : memref<10x5xf32, #tpu.memory_space<smem>>
    %454 = vector.broadcast %453 : f32 to vector<8x128xf32>
    %455 = arith.mulf %301, %454 : vector<8x128xf32>
    %456 = arith.addf %452, %455 : vector<8x128xf32>
    %c9_232 = arith.constant 9 : index
    %c2_233 = arith.constant 2 : index
    %457 = memref.load %arg4[%c9_232, %c2_233] : memref<10x5xf32, #tpu.memory_space<smem>>
    %458 = vector.broadcast %457 : f32 to vector<8x128xf32>
    %459 = arith.mulf %333, %458 : vector<8x128xf32>
    %460 = arith.addf %456, %459 : vector<8x128xf32>
    %c2_234 = arith.constant 2 : index
    %461 = memref.load %arg5[%c2_234] : memref<5xf32, #tpu.memory_space<smem>>
    %462 = vector.broadcast %461 : f32 to vector<8x128xf32>
    %463 = arith.addf %460, %462 : vector<8x128xf32>
    %cst_235 = arith.constant 0.000000e+00 : f32
    %464 = vector.broadcast %cst_235 : f32 to vector<8x128xf32>
    %465 = arith.maximumf %463, %464 : vector<8x128xf32>
    %c0_236 = arith.constant 0 : index
    %c3_237 = arith.constant 3 : index
    %466 = memref.load %arg4[%c0_236, %c3_237] : memref<10x5xf32, #tpu.memory_space<smem>>
    %467 = vector.broadcast %466 : f32 to vector<8x128xf32>
    %468 = arith.mulf %45, %467 : vector<8x128xf32>
    %c1_238 = arith.constant 1 : index
    %c3_239 = arith.constant 3 : index
    %469 = memref.load %arg4[%c1_238, %c3_239] : memref<10x5xf32, #tpu.memory_space<smem>>
    %470 = vector.broadcast %469 : f32 to vector<8x128xf32>
    %471 = arith.mulf %77, %470 : vector<8x128xf32>
    %472 = arith.addf %468, %471 : vector<8x128xf32>
    %c2_240 = arith.constant 2 : index
    %c3_241 = arith.constant 3 : index
    %473 = memref.load %arg4[%c2_240, %c3_241] : memref<10x5xf32, #tpu.memory_space<smem>>
    %474 = vector.broadcast %473 : f32 to vector<8x128xf32>
    %475 = arith.mulf %109, %474 : vector<8x128xf32>
    %476 = arith.addf %472, %475 : vector<8x128xf32>
    %c3_242 = arith.constant 3 : index
    %c3_243 = arith.constant 3 : index
    %477 = memref.load %arg4[%c3_242, %c3_243] : memref<10x5xf32, #tpu.memory_space<smem>>
    %478 = vector.broadcast %477 : f32 to vector<8x128xf32>
    %479 = arith.mulf %141, %478 : vector<8x128xf32>
    %480 = arith.addf %476, %479 : vector<8x128xf32>
    %c4_244 = arith.constant 4 : index
    %c3_245 = arith.constant 3 : index
    %481 = memref.load %arg4[%c4_244, %c3_245] : memref<10x5xf32, #tpu.memory_space<smem>>
    %482 = vector.broadcast %481 : f32 to vector<8x128xf32>
    %483 = arith.mulf %173, %482 : vector<8x128xf32>
    %484 = arith.addf %480, %483 : vector<8x128xf32>
    %c5_246 = arith.constant 5 : index
    %c3_247 = arith.constant 3 : index
    %485 = memref.load %arg4[%c5_246, %c3_247] : memref<10x5xf32, #tpu.memory_space<smem>>
    %486 = vector.broadcast %485 : f32 to vector<8x128xf32>
    %487 = arith.mulf %205, %486 : vector<8x128xf32>
    %488 = arith.addf %484, %487 : vector<8x128xf32>
    %c6_248 = arith.constant 6 : index
    %c3_249 = arith.constant 3 : index
    %489 = memref.load %arg4[%c6_248, %c3_249] : memref<10x5xf32, #tpu.memory_space<smem>>
    %490 = vector.broadcast %489 : f32 to vector<8x128xf32>
    %491 = arith.mulf %237, %490 : vector<8x128xf32>
    %492 = arith.addf %488, %491 : vector<8x128xf32>
    %c7_250 = arith.constant 7 : index
    %c3_251 = arith.constant 3 : index
    %493 = memref.load %arg4[%c7_250, %c3_251] : memref<10x5xf32, #tpu.memory_space<smem>>
    %494 = vector.broadcast %493 : f32 to vector<8x128xf32>
    %495 = arith.mulf %269, %494 : vector<8x128xf32>
    %496 = arith.addf %492, %495 : vector<8x128xf32>
    %c8_252 = arith.constant 8 : index
    %c3_253 = arith.constant 3 : index
    %497 = memref.load %arg4[%c8_252, %c3_253] : memref<10x5xf32, #tpu.memory_space<smem>>
    %498 = vector.broadcast %497 : f32 to vector<8x128xf32>
    %499 = arith.mulf %301, %498 : vector<8x128xf32>
    %500 = arith.addf %496, %499 : vector<8x128xf32>
    %c9_254 = arith.constant 9 : index
    %c3_255 = arith.constant 3 : index
    %501 = memref.load %arg4[%c9_254, %c3_255] : memref<10x5xf32, #tpu.memory_space<smem>>
    %502 = vector.broadcast %501 : f32 to vector<8x128xf32>
    %503 = arith.mulf %333, %502 : vector<8x128xf32>
    %504 = arith.addf %500, %503 : vector<8x128xf32>
    %c3_256 = arith.constant 3 : index
    %505 = memref.load %arg5[%c3_256] : memref<5xf32, #tpu.memory_space<smem>>
    %506 = vector.broadcast %505 : f32 to vector<8x128xf32>
    %507 = arith.addf %504, %506 : vector<8x128xf32>
    %cst_257 = arith.constant 0.000000e+00 : f32
    %508 = vector.broadcast %cst_257 : f32 to vector<8x128xf32>
    %509 = arith.maximumf %507, %508 : vector<8x128xf32>
    %c0_258 = arith.constant 0 : index
    %c4_259 = arith.constant 4 : index
    %510 = memref.load %arg4[%c0_258, %c4_259] : memref<10x5xf32, #tpu.memory_space<smem>>
    %511 = vector.broadcast %510 : f32 to vector<8x128xf32>
    %512 = arith.mulf %45, %511 : vector<8x128xf32>
    %c1_260 = arith.constant 1 : index
    %c4_261 = arith.constant 4 : index
    %513 = memref.load %arg4[%c1_260, %c4_261] : memref<10x5xf32, #tpu.memory_space<smem>>
    %514 = vector.broadcast %513 : f32 to vector<8x128xf32>
    %515 = arith.mulf %77, %514 : vector<8x128xf32>
    %516 = arith.addf %512, %515 : vector<8x128xf32>
    %c2_262 = arith.constant 2 : index
    %c4_263 = arith.constant 4 : index
    %517 = memref.load %arg4[%c2_262, %c4_263] : memref<10x5xf32, #tpu.memory_space<smem>>
    %518 = vector.broadcast %517 : f32 to vector<8x128xf32>
    %519 = arith.mulf %109, %518 : vector<8x128xf32>
    %520 = arith.addf %516, %519 : vector<8x128xf32>
    %c3_264 = arith.constant 3 : index
    %c4_265 = arith.constant 4 : index
    %521 = memref.load %arg4[%c3_264, %c4_265] : memref<10x5xf32, #tpu.memory_space<smem>>
    %522 = vector.broadcast %521 : f32 to vector<8x128xf32>
    %523 = arith.mulf %141, %522 : vector<8x128xf32>
    %524 = arith.addf %520, %523 : vector<8x128xf32>
    %c4_266 = arith.constant 4 : index
    %c4_267 = arith.constant 4 : index
    %525 = memref.load %arg4[%c4_266, %c4_267] : memref<10x5xf32, #tpu.memory_space<smem>>
    %526 = vector.broadcast %525 : f32 to vector<8x128xf32>
    %527 = arith.mulf %173, %526 : vector<8x128xf32>
    %528 = arith.addf %524, %527 : vector<8x128xf32>
    %c5_268 = arith.constant 5 : index
    %c4_269 = arith.constant 4 : index
    %529 = memref.load %arg4[%c5_268, %c4_269] : memref<10x5xf32, #tpu.memory_space<smem>>
    %530 = vector.broadcast %529 : f32 to vector<8x128xf32>
    %531 = arith.mulf %205, %530 : vector<8x128xf32>
    %532 = arith.addf %528, %531 : vector<8x128xf32>
    %c6_270 = arith.constant 6 : index
    %c4_271 = arith.constant 4 : index
    %533 = memref.load %arg4[%c6_270, %c4_271] : memref<10x5xf32, #tpu.memory_space<smem>>
    %534 = vector.broadcast %533 : f32 to vector<8x128xf32>
    %535 = arith.mulf %237, %534 : vector<8x128xf32>
    %536 = arith.addf %532, %535 : vector<8x128xf32>
    %c7_272 = arith.constant 7 : index
    %c4_273 = arith.constant 4 : index
    %537 = memref.load %arg4[%c7_272, %c4_273] : memref<10x5xf32, #tpu.memory_space<smem>>
    %538 = vector.broadcast %537 : f32 to vector<8x128xf32>
    %539 = arith.mulf %269, %538 : vector<8x128xf32>
    %540 = arith.addf %536, %539 : vector<8x128xf32>
    %c8_274 = arith.constant 8 : index
    %c4_275 = arith.constant 4 : index
    %541 = memref.load %arg4[%c8_274, %c4_275] : memref<10x5xf32, #tpu.memory_space<smem>>
    %542 = vector.broadcast %541 : f32 to vector<8x128xf32>
    %543 = arith.mulf %301, %542 : vector<8x128xf32>
    %544 = arith.addf %540, %543 : vector<8x128xf32>
    %c9_276 = arith.constant 9 : index
    %c4_277 = arith.constant 4 : index
    %545 = memref.load %arg4[%c9_276, %c4_277] : memref<10x5xf32, #tpu.memory_space<smem>>
    %546 = vector.broadcast %545 : f32 to vector<8x128xf32>
    %547 = arith.mulf %333, %546 : vector<8x128xf32>
    %548 = arith.addf %544, %547 : vector<8x128xf32>
    %c4_278 = arith.constant 4 : index
    %549 = memref.load %arg5[%c4_278] : memref<5xf32, #tpu.memory_space<smem>>
    %550 = vector.broadcast %549 : f32 to vector<8x128xf32>
    %551 = arith.addf %548, %550 : vector<8x128xf32>
    %cst_279 = arith.constant 0.000000e+00 : f32
    %552 = vector.broadcast %cst_279 : f32 to vector<8x128xf32>
    %553 = arith.maximumf %551, %552 : vector<8x128xf32>
    %c0_280 = arith.constant 0 : index
    %c0_281 = arith.constant 0 : index
    %554 = memref.load %arg6[%c0_280, %c0_281] : memref<5x2xf32, #tpu.memory_space<smem>>
    %555 = vector.broadcast %554 : f32 to vector<8x128xf32>
    %556 = arith.mulf %377, %555 : vector<8x128xf32>
    %c1_282 = arith.constant 1 : index
    %c0_283 = arith.constant 0 : index
    %557 = memref.load %arg6[%c1_282, %c0_283] : memref<5x2xf32, #tpu.memory_space<smem>>
    %558 = vector.broadcast %557 : f32 to vector<8x128xf32>
    %559 = arith.mulf %421, %558 : vector<8x128xf32>
    %560 = arith.addf %556, %559 : vector<8x128xf32>
    %c2_284 = arith.constant 2 : index
    %c0_285 = arith.constant 0 : index
    %561 = memref.load %arg6[%c2_284, %c0_285] : memref<5x2xf32, #tpu.memory_space<smem>>
    %562 = vector.broadcast %561 : f32 to vector<8x128xf32>
    %563 = arith.mulf %465, %562 : vector<8x128xf32>
    %564 = arith.addf %560, %563 : vector<8x128xf32>
    %c3_286 = arith.constant 3 : index
    %c0_287 = arith.constant 0 : index
    %565 = memref.load %arg6[%c3_286, %c0_287] : memref<5x2xf32, #tpu.memory_space<smem>>
    %566 = vector.broadcast %565 : f32 to vector<8x128xf32>
    %567 = arith.mulf %509, %566 : vector<8x128xf32>
    %568 = arith.addf %564, %567 : vector<8x128xf32>
    %c4_288 = arith.constant 4 : index
    %c0_289 = arith.constant 0 : index
    %569 = memref.load %arg6[%c4_288, %c0_289] : memref<5x2xf32, #tpu.memory_space<smem>>
    %570 = vector.broadcast %569 : f32 to vector<8x128xf32>
    %571 = arith.mulf %553, %570 : vector<8x128xf32>
    %572 = arith.addf %568, %571 : vector<8x128xf32>
    %c0_290 = arith.constant 0 : index
    %573 = memref.load %arg7[%c0_290] : memref<2xf32, #tpu.memory_space<smem>>
    %574 = vector.broadcast %573 : f32 to vector<8x128xf32>
    %575 = arith.addf %572, %574 : vector<8x128xf32>
    %c0_291 = arith.constant 0 : index
    %c1_292 = arith.constant 1 : index
    %576 = memref.load %arg6[%c0_291, %c1_292] : memref<5x2xf32, #tpu.memory_space<smem>>
    %577 = vector.broadcast %576 : f32 to vector<8x128xf32>
    %578 = arith.mulf %377, %577 : vector<8x128xf32>
    %c1_293 = arith.constant 1 : index
    %c1_294 = arith.constant 1 : index
    %579 = memref.load %arg6[%c1_293, %c1_294] : memref<5x2xf32, #tpu.memory_space<smem>>
    %580 = vector.broadcast %579 : f32 to vector<8x128xf32>
    %581 = arith.mulf %421, %580 : vector<8x128xf32>
    %582 = arith.addf %578, %581 : vector<8x128xf32>
    %c2_295 = arith.constant 2 : index
    %c1_296 = arith.constant 1 : index
    %583 = memref.load %arg6[%c2_295, %c1_296] : memref<5x2xf32, #tpu.memory_space<smem>>
    %584 = vector.broadcast %583 : f32 to vector<8x128xf32>
    %585 = arith.mulf %465, %584 : vector<8x128xf32>
    %586 = arith.addf %582, %585 : vector<8x128xf32>
    %c3_297 = arith.constant 3 : index
    %c1_298 = arith.constant 1 : index
    %587 = memref.load %arg6[%c3_297, %c1_298] : memref<5x2xf32, #tpu.memory_space<smem>>
    %588 = vector.broadcast %587 : f32 to vector<8x128xf32>
    %589 = arith.mulf %509, %588 : vector<8x128xf32>
    %590 = arith.addf %586, %589 : vector<8x128xf32>
    %c4_299 = arith.constant 4 : index
    %c1_300 = arith.constant 1 : index
    %591 = memref.load %arg6[%c4_299, %c1_300] : memref<5x2xf32, #tpu.memory_space<smem>>
    %592 = vector.broadcast %591 : f32 to vector<8x128xf32>
    %593 = arith.mulf %553, %592 : vector<8x128xf32>
    %594 = arith.addf %590, %593 : vector<8x128xf32>
    %c1_301 = arith.constant 1 : index
    %595 = memref.load %arg7[%c1_301] : memref<2xf32, #tpu.memory_space<smem>>
    %596 = vector.broadcast %595 : f32 to vector<8x128xf32>
    %597 = arith.addf %594, %596 : vector<8x128xf32>
    %598 = arith.subf %597, %575 : vector<8x128xf32>
    %599 = arith.maximumf %575, %597 : vector<8x128xf32>
    %600 = math.absf %598 : vector<8x128xf32>
    %cst_302 = arith.constant 0.000000e+00 : f32
    %601 = vector.broadcast %cst_302 : f32 to vector<8x128xf32>
    %602 = arith.subf %601, %600 : vector<8x128xf32>
    %603 = math.exp %602 : vector<8x128xf32>
    %cst_303 = arith.constant 1.000000e+00 : f32
    %604 = vector.broadcast %cst_303 : f32 to vector<8x128xf32>
    %605 = arith.addf %604, %603 : vector<8x128xf32>
    %606 = math.log %605 : vector<8x128xf32>
    %607 = arith.addf %599, %606 : vector<8x128xf32>
    %608 = arith.subf %575, %607 : vector<8x128xf32>
    %c0_304 = arith.constant 0 : index
    %c0_305 = arith.constant 0 : index
    %c0_306 = arith.constant 0 : index
    %609 = vector.load %arg8[%c0_304, %c0_305, %c0_306] : memref<2x8x128xf32, #tpu.memory_space<vmem>>, vector<1x8x128xf32>
    %610 = vector.shape_cast %609 : vector<1x8x128xf32> to vector<8x128xf32>
    %611 = vector.shape_cast %608 : vector<8x128xf32> to vector<1x8x128xf32>
    tpu.vector_store %arg8[%c0_304, %c0_305, %c0_306], %611 {strides = array<i32>} : memref<2x8x128xf32, #tpu.memory_space<vmem>>, vector<1x8x128xf32>,
    %612 = arith.subf %597, %607 : vector<8x128xf32>
    %c1_307 = arith.constant 1 : index
    %c0_308 = arith.constant 0 : index
    %c0_309 = arith.constant 0 : index
    %613 = vector.load %arg8[%c1_307, %c0_308, %c0_309] : memref<2x8x128xf32, #tpu.memory_space<vmem>>, vector<1x8x128xf32>
    %614 = vector.shape_cast %613 : vector<1x8x128xf32> to vector<8x128xf32>
    %615 = vector.shape_cast %612 : vector<8x128xf32> to vector<1x8x128xf32>
    tpu.vector_store %arg8[%c1_307, %c0_308, %c0_309], %615 {strides = array<i32>} : memref<2x8x128xf32, #tpu.memory_space<vmem>>, vector<1x8x128xf32>,
    return
  }
  func.func @transform_0(%arg0: i32) -> (i32, i32, i32) {
    %c0_i32 = arith.constant 0 : i32
    %c0_i32_0 = arith.constant 0 : i32
    %c0_i32_1 = arith.constant 0 : i32
    return %c0_i32, %c0_i32_0, %arg0 : i32, i32, i32
  }
  func.func @transform_1(%arg0: i32) -> (i32, i32) {
    %c0_i32 = arith.constant 0 : i32
    %c0_i32_0 = arith.constant 0 : i32
    %c0_i32_1 = arith.constant 0 : i32
    return %c0_i32, %c0_i32_0 : i32, i32
  }
  func.func @transform_2(%arg0: i32) -> i32 {
    %c0_i32 = arith.constant 0 : i32
    %c0_i32_0 = arith.constant 0 : i32
    return %c0_i32 : i32
  }
  func.func @transform_3(%arg0: i32) -> (i32, i32) {
    %c0_i32 = arith.constant 0 : i32
    %c0_i32_0 = arith.constant 0 : i32
    %c0_i32_1 = arith.constant 0 : i32
    return %c0_i32, %c0_i32_0 : i32, i32
  }
  func.func @transform_4(%arg0: i32) -> i32 {
    %c0_i32 = arith.constant 0 : i32
    %c0_i32_0 = arith.constant 0 : i32
    return %c0_i32 : i32
  }
  func.func @transform_5(%arg0: i32) -> (i32, i32) {
    %c0_i32 = arith.constant 0 : i32
    %c0_i32_0 = arith.constant 0 : i32
    %c0_i32_1 = arith.constant 0 : i32
    return %c0_i32, %c0_i32_0 : i32, i32
  }
  func.func @transform_6(%arg0: i32) -> i32 {
    %c0_i32 = arith.constant 0 : i32
    %c0_i32_0 = arith.constant 0 : i32
    return %c0_i32 : i32
  }
  func.func @transform_7(%arg0: i32) -> (i32, i32, i32) {
    %c0_i32 = arith.constant 0 : i32
    %c0_i32_0 = arith.constant 0 : i32
    %c0_i32_1 = arith.constant 0 : i32
    return %c0_i32, %c0_i32_0, %arg0 : i32, i32, i32
  }
}

</mosaic_0001>

<llo_original>
// kernel: _lambda_.1
$region0: #{_lambda_.1}
  #allocation0 [shape = 'u32[]', space=smem, size = 0x4, offset = 0x4, fixed_abs, tag = 'smem constant byte address 0x4 - core index']
  #allocation1 [shape = 'u32[144,128]{1,0:T(1,128)}', space=vmem, size = 0x12000, scoped, tag = 'internal scratch']
  %s0 = inlined_call_operand.vmem [shape: f32[7,8,1024], index: 0, kind: input, shape index: {}]
  %s1 = inlined_call_operand.vmem [shape: f32[7,10], index: 1, kind: input, shape index: {}]
  %s2 = inlined_call_operand.vmem [shape: f32[10], index: 2, kind: input, shape index: {}]
  %s3 = inlined_call_operand.vmem [shape: f32[10,5], index: 3, kind: input, shape index: {}]
  %s4 = inlined_call_operand.vmem [shape: f32[5], index: 4, kind: input, shape index: {}]
  %s5 = inlined_call_operand.vmem [shape: f32[5,2], index: 5, kind: input, shape index: {}]
  %s6 = inlined_call_operand.vmem [shape: f32[2], index: 6, kind: input, shape index: {}]
  %s7 = inlined_call_operand.vmem [shape: f32[2,8,1024], index: 7, kind: output, shape index: {}]
  %s8 = sld [smem:[#allocation0]]
  $region157: #{_lambda_.1} parent=0
    _
  %s10 = ssub.s32 1, %s8
  %s11 = scalar_select 0, %s10, %s8
  $region1: #{_lambda_.1} parent=0
    #allocation2 [shape = 'u8[57344]{0}', space=vmem, size = 0xe000, scoped, tag = 'input window, operand 0']
    #allocation3 [shape = 'u8[4096]{0}', space=smem, size = 0x1000, scoped, tag = 'input window, operand 1, single buffered']
    #allocation4 [shape = 's32[2]{0}', space=sflag, size = 0x8, scoped, tag = 'scoped memory for _lambda_.1']
    #allocation5 [shape = 'u8[512]{0}', space=smem, size = 0x200, scoped, tag = 'input window, operand 2, single buffered']
    #allocation6 [shape = 's32[1]{0}', space=sflag, size = 0x4, scoped, tag = 'scoped memory for _lambda_.1']
    #allocation7 [shape = 'u8[8192]{0}', space=smem, size = 0x2000, scoped, tag = 'input window, operand 3, single buffered']
    #allocation8 [shape = 'u8[512]{0}', space=smem, size = 0x200, scoped, tag = 'input window, operand 4, single buffered']
    #allocation9 [shape = 's32[1]{0}', space=sflag, size = 0x4, scoped, tag = 'scoped memory for _lambda_.1']
    #allocation10 [shape = 'u8[4096]{0}', space=smem, size = 0x1000, scoped, tag = 'input window, operand 5, single buffered']
    #allocation11 [shape = 'u8[512]{0}', space=smem, size = 0x200, scoped, tag = 'input window, operand 6, single buffered']
    #allocation12 [shape = 's32[1]{0}', space=sflag, size = 0x4, scoped, tag = 'scoped memory for _lambda_.1']
    #allocation13 [shape = 'u8[16384]{0}', space=vmem, size = 0x4000, scoped, tag = 'output window, operand 0']
    %12 = vsyncpa [#allocation4], 0
    %13 = vsyncpa [#allocation6], 0
    %14 = vsyncpa [#allocation9], 0
    %15 = vsyncpa [#allocation12], 0
    loop: start=0, step=1, limit=10
    $region2: #{_lambda_.1} parent=1 // loop_pre_header
      _
    $region3: #{_lambda_.1} parent=1 // loop_header
      %s17 = sphi 0, %s21
      %p18 = scmp.ge.s32.totalorder %s17, 10
      %s27 = sphi 0, %s29
      %s30 = sphi 0, %s27
      %s31 = sphi 0, %s30
      %s47 = sphi 0, %s31
      %s51 = sphi 0, %s51
      %s53 = sphi 0, %s51
      %s54 = sphi 0, %s53
      %s68 = sphi 0, %s54
      %s72 = sphi 0, %s72
      %s74 = sphi 0, %s72
      %s75 = sphi 0, %s74
      %s89 = sphi 0, %s75
      %s93 = sphi 0, %s93
      %s95 = sphi 0, %s93
      %s96 = sphi 0, %s95
      %s110 = sphi 0, %s96
      %s114 = sphi 0, %s114
      %s116 = sphi 0, %s114
      %s117 = sphi 0, %s116
      %s131 = sphi 0, %s117
      %s135 = sphi 0, %s135
      %s137 = sphi 0, %s135
      %s138 = sphi 0, %s137
      %s152 = sphi 0, %s138
      %s156 = sphi 0, %s156
      %s158 = sphi 0, %s156
      %s159 = sphi 0, %s158
      %s173 = sphi 0, %s159
      %s179 = sphi 0, %s181
      %s182 = sphi 0, %s179
      %s183 = sphi 0, %s182
      %s199 = sphi 0, %s183
    $region4: #{_lambda_.1} parent=1 // loop_header_branch
      %20 = sbr.rel (%p18) target = $region8
    $region5: #{_lambda_.1} parent=1 // loop_body
      %s22 = ssub.s32 %s17, 1
      %s23 = ssub.s32 %s17, 2
      %s24 = sadd.s32 %s17, 1
      %s25 = ssub.s32 %s17, %s24
      %p26 = scmp.eq.s32.totalorder %s25, 0
      %s28 = sadd.s32 %s27, 1
      %s29 = scalar_select %p26, %s27, %s28
      %p32 = pneg %p26
      %p33 = scmp.eq.s32.totalorder %s17, 7
      %p34 = por %p32, %p33
      %p35 = scmp.ne.s32.totalorder %s27, %s30
      %p36 = scmp.eq.s32.totalorder %s17, 0
      %p37 = por %p35, %p36
      %p38 = scmp.ne.s32.totalorder %s27, %s30
      %p39 = scmp.eq.s32.totalorder %s22, 7
      %p40 = por %p38, %p39
      %p41 = scmp.ne.s32.totalorder %s30, %s31
      %p42 = scmp.eq.s32.totalorder %s22, 0
      %p43 = por %p41, %p42
      %p44 = scmp.ne.s32.totalorder %s30, %s31
      %p45 = scmp.eq.s32.totalorder %s23, 7
      %p46 = por %p44, %p45
      %p48 = scmp.ne.s32.totalorder %s31, %s47
      %p49 = scmp.eq.s32.totalorder %s23, 0
      %p50 = por %p48, %p49
      %s52 = sadd.s32 %s51, 1
      %p55 = scmp.eq.s32.totalorder %s17, 7
      %p56 = scmp.ne.s32.totalorder %s51, %s53
      %p57 = scmp.eq.s32.totalorder %s17, 0
      %p58 = por %p56, %p57
      %p59 = scmp.ne.s32.totalorder %s51, %s53
      %p60 = scmp.eq.s32.totalorder %s22, 7
      %p61 = por %p59, %p60
      %p62 = scmp.ne.s32.totalorder %s53, %s54
      %p63 = scmp.eq.s32.totalorder %s22, 0
      %p64 = por %p62, %p63
      %p65 = scmp.ne.s32.totalorder %s53, %s54
      %p66 = scmp.eq.s32.totalorder %s23, 7
      %p67 = por %p65, %p66
      %p69 = scmp.ne.s32.totalorder %s54, %s68
      %p70 = scmp.eq.s32.totalorder %s23, 0
      %p71 = por %p69, %p70
      %s73 = sadd.s32 %s72, 1
      %p76 = scmp.eq.s32.totalorder %s17, 7
      %p77 = scmp.ne.s32.totalorder %s72, %s74
      %p78 = scmp.eq.s32.totalorder %s17, 0
      %p79 = por %p77, %p78
      %p80 = scmp.ne.s32.totalorder %s72, %s74
      %p81 = scmp.eq.s32.totalorder %s22, 7
      %p82 = por %p80, %p81
      %p83 = scmp.ne.s32.totalorder %s74, %s75
      %p84 = scmp.eq.s32.totalorder %s22, 0
      %p85 = por %p83, %p84
      %p86 = scmp.ne.s32.totalorder %s74, %s75
      %p87 = scmp.eq.s32.totalorder %s23, 7
      %p88 = por %p86, %p87
      %p90 = scmp.ne.s32.totalorder %s75, %s89
      %p91 = scmp.eq.s32.totalorder %s23, 0
      %p92 = por %p90, %p91
      %s94 = sadd.s32 %s93, 1
      %p97 = scmp.eq.s32.totalorder %s17, 7
      %p98 = scmp.ne.s32.totalorder %s93, %s95
      %p99 = scmp.eq.s32.totalorder %s17, 0
      %p100 = por %p98, %p99
      %p101 = scmp.ne.s32.totalorder %s93, %s95
      %p102 = scmp.eq.s32.totalorder %s22, 7
      %p103 = por %p101, %p102
      %p104 = scmp.ne.s32.totalorder %s95, %s96
      %p105 = scmp.eq.s32.totalorder %s22, 0
      %p106 = por %p104, %p105
      %p107 = scmp.ne.s32.totalorder %s95, %s96
      %p108 = scmp.eq.s32.totalorder %s23, 7
      %p109 = por %p107, %p108
      %p111 = scmp.ne.s32.totalorder %s96, %s110
      %p112 = scmp.eq.s32.totalorder %s23, 0
      %p113 = por %p111, %p112
      %s115 = sadd.s32 %s114, 1
      %p118 = scmp.eq.s32.totalorder %s17, 7
      %p119 = scmp.ne.s32.totalorder %s114, %s116
      %p120 = scmp.eq.s32.totalorder %s17, 0
      %p121 = por %p119, %p120
      %p122 = scmp.ne.s32.totalorder %s114, %s116
      %p123 = scmp.eq.s32.totalorder %s22, 7
      %p124 = por %p122, %p123
      %p125 = scmp.ne.s32.totalorder %s116, %s117
      %p126 = scmp.eq.s32.totalorder %s22, 0
      %p127 = por %p125, %p126
      %p128 = scmp.ne.s32.totalorder %s116, %s117
      %p129 = scmp.eq.s32.totalorder %s23, 7
      %p130 = por %p128, %p129
      %p132 = scmp.ne.s32.totalorder %s117, %s131
      %p133 = scmp.eq.s32.totalorder %s23, 0
      %p134 = por %p132, %p133
      %s136 = sadd.s32 %s135, 1
      %p139 = scmp.eq.s32.totalorder %s17, 7
      %p140 = scmp.ne.s32.totalorder %s135, %s137
      %p141 = scmp.eq.s32.totalorder %s17, 0
      %p142 = por %p140, %p141
      %p143 = scmp.ne.s32.totalorder %s135, %s137
      %p144 = scmp.eq.s32.totalorder %s22, 7
      %p145 = por %p143, %p144
      %p146 = scmp.ne.s32.totalorder %s137, %s138
      %p147 = scmp.eq.s32.totalorder %s22, 0
      %p148 = por %p146, %p147
      %p149 = scmp.ne.s32.totalorder %s137, %s138
      %p150 = scmp.eq.s32.totalorder %s23, 7
      %p151 = por %p149, %p150
      %p153 = scmp.ne.s32.totalorder %s138, %s152
      %p154 = scmp.eq.s32.totalorder %s23, 0
      %p155 = por %p153, %p154
      %s157 = sadd.s32 %s156, 1
      %p160 = scmp.eq.s32.totalorder %s17, 7
      %p161 = scmp.ne.s32.totalorder %s156, %s158
      %p162 = scmp.eq.s32.totalorder %s17, 0
      %p163 = por %p161, %p162
      %p164 = scmp.ne.s32.totalorder %s156, %s158
      %p165 = scmp.eq.s32.totalorder %s22, 7
      %p166 = por %p164, %p165
      %p167 = scmp.ne.s32.totalorder %s158, %s159
      %p168 = scmp.eq.s32.totalorder %s22, 0
      %p169 = por %p167, %p168
      %p170 = scmp.ne.s32.totalorder %s158, %s159
      %p171 = scmp.eq.s32.totalorder %s23, 7
      %p172 = por %p170, %p171
      %p174 = scmp.ne.s32.totalorder %s159, %s173
      %p175 = scmp.eq.s32.totalorder %s23, 0
      %p176 = por %p174, %p175
      %s177 = ssub.s32 %s17, %s24
      %p178 = scmp.eq.s32.totalorder %s177, 0
      %s180 = sadd.s32 %s179, 1
      %s181 = scalar_select %p178, %s179, %s180
      %p184 = pneg %p178
      %p185 = scmp.eq.s32.totalorder %s17, 7
      %p186 = por %p184, %p185
      %p187 = scmp.ne.s32.totalorder %s179, %s182
      %p188 = scmp.eq.s32.totalorder %s17, 0
      %p189 = por %p187, %p188
      %p190 = scmp.ne.s32.totalorder %s179, %s182
      %p191 = scmp.eq.s32.totalorder %s22, 7
      %p192 = por %p190, %p191
      %p193 = scmp.ne.s32.totalorder %s182, %s183
      %p194 = scmp.eq.s32.totalorder %s22, 0
      %p195 = por %p193, %p194
      %p196 = scmp.ne.s32.totalorder %s182, %s183
      %p197 = scmp.eq.s32.totalorder %s23, 7
      %p198 = por %p196, %p197
      %p200 = scmp.ne.s32.totalorder %s183, %s199
      %p201 = scmp.eq.s32.totalorder %s23, 0
      %p202 = por %p200, %p201
      %p203 = scmp.le.s32.totalorder 1, %s17
      %p204 = scmp.lt.s32.totalorder %s17, 9
      %p205 = pnand %p203, %p204
      %p206 = pneg %p205
      // Predicated region
      $region9: #{_lambda_.1} parent=5 // pred_check
        _
      $region10: #{_lambda_.1} parent=5 // pred_check_branch
        %208 = sbr.rel (%p205) target = $region12
      $region11: #{_lambda_.1} parent=5 // pred_region
        %s209 = ssub.s32 %s17, 1
        // Predicated region
        $region13: #{_lambda_.1} parent=11 // pred_check
          %p210 = pneg %p64
        $region14: #{_lambda_.1} parent=11 // pred_check_branch
          %212 = sbr.rel (%p210) target = $region16
        $region15: #{_lambda_.1} parent=11 // pred_region
          %s214 = ssub.s32 128, 128
          %215 = vsyncadd [#allocation4], %s214
          %s217 = sshll.u32 %s1, 4
          %s218 = int_to_ptr.vmem [resolvable:$true] %s217
          %220 = dma.vmem_to_smem %s218, 128, [#allocation3], [#allocation4]
        $region16: #{_lambda_.1} parent=11 // pred_fallthru
          _
        // Predicated region
        $region17: #{_lambda_.1} parent=11 // pred_check
          %p221 = pneg %p85
        $region18: #{_lambda_.1} parent=11 // pred_check_branch
          %223 = sbr.rel (%p221) target = $region20
        $region19: #{_lambda_.1} parent=11 // pred_region
          %s225 = ssub.s32 16, 16
          %226 = vsyncadd [#allocation6], %s225
          %s228 = sshll.u32 %s2, 4
          %s229 = int_to_ptr.vmem [resolvable:$true] %s228
          %231 = dma.vmem_to_smem %s229, 16, [#allocation5], [#allocation6]
        $region20: #{_lambda_.1} parent=11 // pred_fallthru
          _
        // Predicated region
        $region21: #{_lambda_.1} parent=11 // pred_check
          %p232 = pneg %p106
        $region22: #{_lambda_.1} parent=11 // pred_check_branch
          %234 = sbr.rel (%p232) target = $region24
        $region23: #{_lambda_.1} parent=11 // pred_region
          %s236 = ssub.s32 256, 256
          %237 = vsyncadd [#allocation6], %s236
          %s238 = sshll.u32 %s3, 4
          %s239 = int_to_ptr.vmem [resolvable:$true] %s238
          %244 = dma.vmem_to_smem %s239, 256, [#allocation7], [#allocation6], 128, 128, 8
        $region24: #{_lambda_.1} parent=11 // pred_fallthru
          _
        // Predicated region
        $region25: #{_lambda_.1} parent=11 // pred_check
          %p245 = pneg %p127
        $region26: #{_lambda_.1} parent=11 // pred_check_branch
          %247 = sbr.rel (%p245) target = $region28
        $region27: #{_lambda_.1} parent=11 // pred_region
          %s249 = ssub.s32 16, 16
          %250 = vsyncadd [#allocation9], %s249
          %s252 = sshll.u32 %s4, 4
          %s253 = int_to_ptr.vmem [resolvable:$true] %s252
          %255 = dma.vmem_to_smem %s253, 16, [#allocation8], [#allocation9]
        $region28: #{_lambda_.1} parent=11 // pred_fallthru
          _
        // Predicated region
        $region29: #{_lambda_.1} parent=11 // pred_check
          %p256 = pneg %p148
        $region30: #{_lambda_.1} parent=11 // pred_check_branch
          %258 = sbr.rel (%p256) target = $region32
        $region31: #{_lambda_.1} parent=11 // pred_region
          %s260 = ssub.s32 128, 128
          %261 = vsyncadd [#allocation9], %s260
          %s263 = sshll.u32 %s5, 4
          %s264 = int_to_ptr.vmem [resolvable:$true] %s263
          %266 = dma.vmem_to_smem %s264, 128, [#allocation10], [#allocation9]
        $region32: #{_lambda_.1} parent=11 // pred_fallthru
          _
        // Predicated region
        $region33: #{_lambda_.1} parent=11 // pred_check
          %p267 = pneg %p169
        $region34: #{_lambda_.1} parent=11 // pred_check_branch
          %269 = sbr.rel (%p267) target = $region36
        $region35: #{_lambda_.1} parent=11 // pred_region
          %s271 = ssub.s32 16, 16
          %272 = vsyncadd [#allocation12], %s271
          %s274 = sshll.u32 %s6, 4
          %s275 = int_to_ptr.vmem [resolvable:$true] %s274
          %277 = dma.vmem_to_smem %s275, 16, [#allocation11], [#allocation12]
        $region36: #{_lambda_.1} parent=11 // pred_fallthru
          _
      $region12: #{_lambda_.1} parent=5 // pred_fallthru
        _
      %p278 = scmp.lt.s32.totalorder %s17, 8
      // Predicated region
      $region37: #{_lambda_.1} parent=5 // pred_check
        %p279 = pneg %p278
      $region38: #{_lambda_.1} parent=5 // pred_check_branch
        %281 = sbr.rel (%p279) target = $region40
      $region39: #{_lambda_.1} parent=5 // pred_region
        // Predicated region
        $region41: #{_lambda_.1} parent=39 // pred_check
          %p282 = pneg %p37
        $region42: #{_lambda_.1} parent=39 // pred_check_branch
          %284 = sbr.rel (%p282) target = $region44
        $region43: #{_lambda_.1} parent=39 // pred_region
          %s285 = sand.u32 %s27, 1
          %s286 = sand.u32 %s27, 1
          %s287 = smul.addr %s286, 56
          %s288 = scalar_lea.vmem [#allocation2], %s287
          %s289 = smul.addr %s17, 8
          %s290 = scalar_lea.vmem %s0, %s289
          // Predicated region
          $region45: #{_lambda_.1} parent=43 // pred_check
            _
          $region46: #{_lambda_.1} parent=43 // pred_check_branch
            %292 = sbr.rel (0) target = $region48
          $region47: #{_lambda_.1} parent=43 // pred_region
            // Predicated region
            $region49: #{_lambda_.1} parent=47 // pred_check
              _
            $region50: #{_lambda_.1} parent=47 // pred_check_branch
              %294 = sbr.rel (0) target = $region52
            $region51: #{_lambda_.1} parent=47 // pred_region
              // Predicated region
              $region64: #{_lambda_.1} parent=51 // pred_check
                _
              $region65: #{_lambda_.1} parent=51 // pred_check_branch
                %321 = sbr.rel (0) target = $region67
              $region66: #{_lambda_.1} parent=51 // pred_region
                loop: start=0, step=1, limit=1
                $region68: #{_lambda_.1} parent=66 // loop_pre_header
                  _
                $region69: #{_lambda_.1} parent=66 // loop_header
                  %s323 = sphi 0, %s327
                  %p324 = scmp.ge.s32.totalorder %s323, 1
                  %s328 = sphi %s290, %s290
                  %s329 = sphi %s288, %s288
                $region70: #{_lambda_.1} parent=66 // loop_header_branch
                  %326 = sbr.rel (%p324) target = $region74
                $region71: #{_lambda_.1} parent=66 // loop_body
                  %v330 = vld [vmem:[%s328] sm:$0xff]
                  %331 = vst [vmem:[%s329] sm:$0xff] %v330
                  %v332 = vld [vmem:[%s328 + $0x40] sm:$0xff]
                  %333 = vst [vmem:[%s329 + $0x8] sm:$0xff] %v332
                  %v334 = vld [vmem:[%s328 + $0x80] sm:$0xff]
                  %335 = vst [vmem:[%s329 + $0x10] sm:$0xff] %v334
                  %v336 = vld [vmem:[%s328 + $0xc0] sm:$0xff]
                  %337 = vst [vmem:[%s329 + $0x18] sm:$0xff] %v336
                  %v338 = vld [vmem:[%s328 + $0x100] sm:$0xff]
                  %339 = vst [vmem:[%s329 + $0x20] sm:$0xff] %v338
                  %v340 = vld [vmem:[%s328 + $0x140] sm:$0xff]
                  %341 = vst [vmem:[%s329 + $0x28] sm:$0xff] %v340
                  %v342 = vld [vmem:[%s328 + $0x180] sm:$0xff]
                  %343 = vst [vmem:[%s329 + $0x30] sm:$0xff] %v342
                $region72: #{_lambda_.1} parent=66 // loop_footer
                  %s327 = sadd.s32 1, %s323
                $region73: #{_lambda_.1} parent=66 // loop_footer_branch
                  %322 = sbr.rel target = $region69
                $region74: #{_lambda_.1} parent=66 // loop_exit
                  _
              $region67: #{_lambda_.1} parent=51 // pred_fallthru
                _
              // Predicated region
              $region75: #{_lambda_.1} parent=51 // pred_check
                _
              $region76: #{_lambda_.1} parent=51 // pred_check_branch
                %345 = sbr.rel target = $region78
              $region77: #{_lambda_.1} parent=51 // pred_region
                _
              $region78: #{_lambda_.1} parent=51 // pred_fallthru
                _
            $region52: #{_lambda_.1} parent=47 // pred_fallthru
              _
            // Predicated region
            $region53: #{_lambda_.1} parent=47 // pred_check
              _
            $region54: #{_lambda_.1} parent=47 // pred_check_branch
              %296 = sbr.rel target = $region56
            $region55: #{_lambda_.1} parent=47 // pred_region
              loop: start=0, step=1, limit=1
              $region57: #{_lambda_.1} parent=55 // loop_pre_header
                _
              $region58: #{_lambda_.1} parent=55 // loop_header
                %s299 = sphi 0, %s303
                %p300 = scmp.ge.s32.totalorder %s299, 1
                %s304 = sphi %s290, %s290
                %s305 = sphi %s288, %s288
              $region59: #{_lambda_.1} parent=55 // loop_header_branch
                %302 = sbr.rel (%p300) target = $region63
              $region60: #{_lambda_.1} parent=55 // loop_body
                %v306 = vld [vmem:[%s304] sm:$0xff]
                %307 = vst [vmem:[%s305] sm:$0xff] %v306
                %v308 = vld [vmem:[%s304 + $0x40] sm:$0xff]
                %309 = vst [vmem:[%s305 + $0x8] sm:$0xff] %v308
                %v310 = vld [vmem:[%s304 + $0x80] sm:$0xff]
                %311 = vst [vmem:[%s305 + $0x10] sm:$0xff] %v310
                %v312 = vld [vmem:[%s304 + $0xc0] sm:$0xff]
                %313 = vst [vmem:[%s305 + $0x18] sm:$0xff] %v312
                %v314 = vld [vmem:[%s304 + $0x100] sm:$0xff]
                %315 = vst [vmem:[%s305 + $0x20] sm:$0xff] %v314
                %v316 = vld [vmem:[%s304 + $0x140] sm:$0xff]
                %317 = vst [vmem:[%s305 + $0x28] sm:$0xff] %v316
                %v318 = vld [vmem:[%s304 + $0x180] sm:$0xff]
                %319 = vst [vmem:[%s305 + $0x30] sm:$0xff] %v318
              $region61: #{_lambda_.1} parent=55 // loop_footer
                %s303 = sadd.s32 1, %s299
              $region62: #{_lambda_.1} parent=55 // loop_footer_branch
                %298 = sbr.rel target = $region58
              $region63: #{_lambda_.1} parent=55 // loop_exit
                _
            $region56: #{_lambda_.1} parent=47 // pred_fallthru
              _
          $region48: #{_lambda_.1} parent=43 // pred_fallthru
            _
          %346 = vnop
        $region44: #{_lambda_.1} parent=39 // pred_fallthru
          _
      $region40: #{_lambda_.1} parent=5 // pred_fallthru
        _
      %p347 = scmp.le.s32.totalorder 1, %s17
      %p348 = scmp.lt.s32.totalorder %s17, 9
      %p349 = pnand %p347, %p348
      %p350 = pneg %p349
      // Predicated region
      $region79: #{_lambda_.1} parent=5 // pred_check
        _
      $region80: #{_lambda_.1} parent=5 // pred_check_branch
        %352 = sbr.rel (%p349) target = $region82
      $region81: #{_lambda_.1} parent=5 // pred_region
        %s353 = ssub.s32 %s17, 1
        %s354 = sand.u32 %s30, 1
        %s355 = sand.u32 %s30, 1
        %s356 = smul.addr %s355, 56
        %s357 = scalar_lea.vmem [#allocation2], %s356
        // Predicated region
        $region83: #{_lambda_.1} parent=81 // pred_check
          %p358 = pneg %p43
        $region84: #{_lambda_.1} parent=81 // pred_check_branch
          %360 = sbr.rel (%p358) target = $region86
        $region85: #{_lambda_.1} parent=81 // pred_region
          _
        $region86: #{_lambda_.1} parent=81 // pred_fallthru
          _
        // Predicated region
        $region87: #{_lambda_.1} parent=81 // pred_check
          %p361 = pneg %p64
        $region88: #{_lambda_.1} parent=81 // pred_check_branch
          %363 = sbr.rel (%p361) target = $region90
        $region89: #{_lambda_.1} parent=81 // pred_region
          %364 = dma.done [#allocation4], 128
        $region90: #{_lambda_.1} parent=81 // pred_fallthru
          _
        // Predicated region
        $region91: #{_lambda_.1} parent=81 // pred_check
          %p365 = pneg %p85
        $region92: #{_lambda_.1} parent=81 // pred_check_branch
          %367 = sbr.rel (%p365) target = $region94
        $region93: #{_lambda_.1} parent=81 // pred_region
          %368 = dma.done [#allocation6], 16
        $region94: #{_lambda_.1} parent=81 // pred_fallthru
          _
        // Predicated region
        $region95: #{_lambda_.1} parent=81 // pred_check
          %p369 = pneg %p106
        $region96: #{_lambda_.1} parent=81 // pred_check_branch
          %371 = sbr.rel (%p369) target = $region98
        $region97: #{_lambda_.1} parent=81 // pred_region
          %372 = dma.done [#allocation6], 256
        $region98: #{_lambda_.1} parent=81 // pred_fallthru
          _
        // Predicated region
        $region99: #{_lambda_.1} parent=81 // pred_check
          %p373 = pneg %p127
        $region100: #{_lambda_.1} parent=81 // pred_check_branch
          %375 = sbr.rel (%p373) target = $region102
        $region101: #{_lambda_.1} parent=81 // pred_region
          %376 = dma.done [#allocation9], 16
        $region102: #{_lambda_.1} parent=81 // pred_fallthru
          _
        // Predicated region
        $region103: #{_lambda_.1} parent=81 // pred_check
          %p377 = pneg %p148
        $region104: #{_lambda_.1} parent=81 // pred_check_branch
          %379 = sbr.rel (%p377) target = $region106
        $region105: #{_lambda_.1} parent=81 // pred_region
          %380 = dma.done [#allocation9], 128
        $region106: #{_lambda_.1} parent=81 // pred_fallthru
          _
        // Predicated region
        $region107: #{_lambda_.1} parent=81 // pred_check
          %p381 = pneg %p169
        $region108: #{_lambda_.1} parent=81 // pred_check_branch
          %383 = sbr.rel (%p381) target = $region110
        $region109: #{_lambda_.1} parent=81 // pred_region
          %384 = dma.done [#allocation12], 16
        $region110: #{_lambda_.1} parent=81 // pred_fallthru
          _
        %385 = sfence
        %s386 = sand.u32 %s30, 1
        %s387 = sand.u32 %s30, 1
        %s388 = smul.addr %s387, 56
        %s389 = scalar_lea.vmem [#allocation2], %s388
        %p390 = pneg %p43
        %p391 = pneg %p40
        %p392 = pneg %p64
        %p393 = pneg %p61
        %p394 = pneg %p85
        %p395 = pneg %p82
        %p396 = pneg %p106
        %p397 = pneg %p103
        %p398 = pneg %p127
        %p399 = pneg %p124
        %p400 = pneg %p148
        %p401 = pneg %p145
        %p402 = pneg %p169
        %p403 = pneg %p166
        %p404 = pneg %p195
        %p405 = pneg %p192
        %s406 = sand.u32 %s182, 1
        %s407 = sand.u32 %s182, 1
        %s408 = smul.addr %s407, 16
        %s409 = scalar_lea.vmem [#allocation13], %s408
        %v410 = vld [vmem:[%s357] sm:$0xff]
        %s411 = scalar_lea.vmem %s357, 8 [#allocation2]
        %v412 = vld [vmem:[%s411] sm:$0xff]
        %s413 = scalar_lea.vmem %s357, 16 [#allocation2]
        %v414 = vld [vmem:[%s413] sm:$0xff]
        %s415 = scalar_lea.vmem %s357, 24 [#allocation2]
        %v416 = vld [vmem:[%s415] sm:$0xff]
        %s417 = scalar_lea.vmem %s357, 32 [#allocation2]
        %v418 = vld [vmem:[%s417] sm:$0xff]
        %s419 = scalar_lea.vmem %s357, 40 [#allocation2]
        %v420 = vld [vmem:[%s419] sm:$0xff]
        %s421 = scalar_lea.vmem %s357, 48 [#allocation2]
        %v422 = vld [vmem:[%s421] sm:$0xff]
        %s423 = sld [smem:[#allocation3]]
        %v424 = vstv %s423
        %v425 = vmul.f32 %v410, %v424
        %s426 = sld [smem:[#allocation3 + $0x80]]
        %v427 = vstv %s426
        %v428 = vmul.f32 %v412, %v427
        %v429 = vadd.f32 %v425, %v428
        %s430 = sld [smem:[#allocation3 + $0x100]]
        %v431 = vstv %s430
        %v432 = vmul.f32 %v414, %v431
        %v433 = vadd.f32 %v429, %v432
        %s434 = sld [smem:[#allocation3 + $0x180]]
        %v435 = vstv %s434
        %v436 = vmul.f32 %v416, %v435
        %v437 = vadd.f32 %v433, %v436
        %s438 = sld [smem:[#allocation3 + $0x200]]
        %v439 = vstv %s438
        %v440 = vmul.f32 %v418, %v439
        %v441 = vadd.f32 %v437, %v440
        %s442 = sld [smem:[#allocation3 + $0x280]]
        %v443 = vstv %s442
        %v444 = vmul.f32 %v420, %v443
        %v445 = vadd.f32 %v441, %v444
        %s446 = sld [smem:[#allocation3 + $0x300]]
        %v447 = vstv %s446
        %v448 = vmul.f32 %v422, %v447
        %v449 = vadd.f32 %v445, %v448
        %s450 = sld [smem:[#allocation5]]
        %v451 = vstv %s450
        %v452 = vadd.f32 %v449, %v451
        %v453 = vmax.f32 %v452, 0.0
        %s454 = sld [smem:[#allocation3 + $0x1]]
        %v455 = vstv %s454
        %v456 = vmul.f32 %v410, %v455
        %s457 = sld [smem:[#allocation3 + $0x81]]
        %v458 = vstv %s457
        %v459 = vmul.f32 %v412, %v458
        %v460 = vadd.f32 %v456, %v459
        %s461 = sld [smem:[#allocation3 + $0x101]]
        %v462 = vstv %s461
        %v463 = vmul.f32 %v414, %v462
        %v464 = vadd.f32 %v460, %v463
        %s465 = sld [smem:[#allocation3 + $0x181]]
        %v466 = vstv %s465
        %v467 = vmul.f32 %v416, %v466
        %v468 = vadd.f32 %v464, %v467
        %s469 = sld [smem:[#allocation3 + $0x201]]
        %v470 = vstv %s469
        %v471 = vmul.f32 %v418, %v470
        %v472 = vadd.f32 %v468, %v471
        %s473 = sld [smem:[#allocation3 + $0x281]]
        %v474 = vstv %s473
        %v475 = vmul.f32 %v420, %v474
        %v476 = vadd.f32 %v472, %v475
        %s477 = sld [smem:[#allocation3 + $0x301]]
        %v478 = vstv %s477
        %v479 = vmul.f32 %v422, %v478
        %v480 = vadd.f32 %v476, %v479
        %s481 = sld [smem:[#allocation5 + $0x1]]
        %v482 = vstv %s481
        %v483 = vadd.f32 %v480, %v482
        %v484 = vmax.f32 %v483, 0.0
        %s485 = sld [smem:[#allocation3 + $0x2]]
        %v486 = vstv %s485
        %v487 = vmul.f32 %v410, %v486
        %s488 = sld [smem:[#allocation3 + $0x82]]
        %v489 = vstv %s488
        %v490 = vmul.f32 %v412, %v489
        %v491 = vadd.f32 %v487, %v490
        %s492 = sld [smem:[#allocation3 + $0x102]]
        %v493 = vstv %s492
        %v494 = vmul.f32 %v414, %v493
        %v495 = vadd.f32 %v491, %v494
        %s496 = sld [smem:[#allocation3 + $0x182]]
        %v497 = vstv %s496
        %v498 = vmul.f32 %v416, %v497
        %v499 = vadd.f32 %v495, %v498
        %s500 = sld [smem:[#allocation3 + $0x202]]
        %v501 = vstv %s500
        %v502 = vmul.f32 %v418, %v501
        %v503 = vadd.f32 %v499, %v502
        %s504 = sld [smem:[#allocation3 + $0x282]]
        %v505 = vstv %s504
        %v506 = vmul.f32 %v420, %v505
        %v507 = vadd.f32 %v503, %v506
        %s508 = sld [smem:[#allocation3 + $0x302]]
        %v509 = vstv %s508
        %v510 = vmul.f32 %v422, %v509
        %v511 = vadd.f32 %v507, %v510
        %s512 = sld [smem:[#allocation5 + $0x2]]
        %v513 = vstv %s512
        %v514 = vadd.f32 %v511, %v513
        %v515 = vmax.f32 %v514, 0.0
        %s516 = sld [smem:[#allocation3 + $0x3]]
        %v517 = vstv %s516
        %v518 = vmul.f32 %v410, %v517
        %s519 = sld [smem:[#allocation3 + $0x83]]
        %v520 = vstv %s519
        %v521 = vmul.f32 %v412, %v520
        %v522 = vadd.f32 %v518, %v521
        %s523 = sld [smem:[#allocation3 + $0x103]]
        %v524 = vstv %s523
        %v525 = vmul.f32 %v414, %v524
        %v526 = vadd.f32 %v522, %v525
        %s527 = sld [smem:[#allocation3 + $0x183]]
        %v528 = vstv %s527
        %v529 = vmul.f32 %v416, %v528
        %v530 = vadd.f32 %v526, %v529
        %s531 = sld [smem:[#allocation3 + $0x203]]
        %v532 = vstv %s531
        %v533 = vmul.f32 %v418, %v532
        %v534 = vadd.f32 %v530, %v533
        %s535 = sld [smem:[#allocation3 + $0x283]]
        %v536 = vstv %s535
        %v537 = vmul.f32 %v420, %v536
        %v538 = vadd.f32 %v534, %v537
        %s539 = sld [smem:[#allocation3 + $0x303]]
        %v540 = vstv %s539
        %v541 = vmul.f32 %v422, %v540
        %v542 = vadd.f32 %v538, %v541
        %s543 = sld [smem:[#allocation5 + $0x3]]
        %v544 = vstv %s543
        %v545 = vadd.f32 %v542, %v544
        %v546 = vmax.f32 %v545, 0.0
        %s547 = sld [smem:[#allocation3 + $0x4]]
        %v548 = vstv %s547
        %v549 = vmul.f32 %v410, %v548
        %s550 = sld [smem:[#allocation3 + $0x84]]
        %v551 = vstv %s550
        %v552 = vmul.f32 %v412, %v551
        %v553 = vadd.f32 %v549, %v552
        %s554 = sld [smem:[#allocation3 + $0x104]]
        %v555 = vstv %s554
        %v556 = vmul.f32 %v414, %v555
        %v557 = vadd.f32 %v553, %v556
        %s558 = sld [smem:[#allocation3 + $0x184]]
        %v559 = vstv %s558
        %v560 = vmul.f32 %v416, %v559
        %v561 = vadd.f32 %v557, %v560
        %s562 = sld [smem:[#allocation3 + $0x204]]
        %v563 = vstv %s562
        %v564 = vmul.f32 %v418, %v563
        %v565 = vadd.f32 %v561, %v564
        %s566 = sld [smem:[#allocation3 + $0x284]]
        %v567 = vstv %s566
        %v568 = vmul.f32 %v420, %v567
        %v569 = vadd.f32 %v565, %v568
        %s570 = sld [smem:[#allocation3 + $0x304]]
        %v571 = vstv %s570
        %v572 = vmul.f32 %v422, %v571
        %v573 = vadd.f32 %v569, %v572
        %s574 = sld [smem:[#allocation5 + $0x4]]
        %v575 = vstv %s574
        %v576 = vadd.f32 %v573, %v575
        %v577 = vmax.f32 %v576, 0.0
        %s578 = sld [smem:[#allocation3 + $0x5]]
        %v579 = vstv %s578
        %v580 = vmul.f32 %v410, %v579
        %s581 = sld [smem:[#allocation3 + $0x85]]
        %v582 = vstv %s581
        %v583 = vmul.f32 %v412, %v582
        %v584 = vadd.f32 %v580, %v583
        %s585 = sld [smem:[#allocation3 + $0x105]]
        %v586 = vstv %s585
        %v587 = vmul.f32 %v414, %v586
        %v588 = vadd.f32 %v584, %v587
        %s589 = sld [smem:[#allocation3 + $0x185]]
        %v590 = vstv %s589
        %v591 = vmul.f32 %v416, %v590
        %v592 = vadd.f32 %v588, %v591
        %s593 = sld [smem:[#allocation3 + $0x205]]
        %v594 = vstv %s593
        %v595 = vmul.f32 %v418, %v594
        %v596 = vadd.f32 %v592, %v595
        %s597 = sld [smem:[#allocation3 + $0x285]]
        %v598 = vstv %s597
        %v599 = vmul.f32 %v420, %v598
        %v600 = vadd.f32 %v596, %v599
        %s601 = sld [smem:[#allocation3 + $0x305]]
        %v602 = vstv %s601
        %v603 = vmul.f32 %v422, %v602
        %v604 = vadd.f32 %v600, %v603
        %s605 = sld [smem:[#allocation5 + $0x5]]
        %v606 = vstv %s605
        %v607 = vadd.f32 %v604, %v606
        %v608 = vmax.f32 %v607, 0.0
        %s609 = sld [smem:[#allocation3 + $0x6]]
        %v610 = vstv %s609
        %v611 = vmul.f32 %v410, %v610
        %s612 = sld [smem:[#allocation3 + $0x86]]
        %v613 = vstv %s612
        %v614 = vmul.f32 %v412, %v613
        %v615 = vadd.f32 %v611, %v614
        %s616 = sld [smem:[#allocation3 + $0x106]]
        %v617 = vstv %s616
        %v618 = vmul.f32 %v414, %v617
        %v619 = vadd.f32 %v615, %v618
        %s620 = sld [smem:[#allocation3 + $0x186]]
        %v621 = vstv %s620
        %v622 = vmul.f32 %v416, %v621
        %v623 = vadd.f32 %v619, %v622
        %s624 = sld [smem:[#allocation3 + $0x206]]
        %v625 = vstv %s624
        %v626 = vmul.f32 %v418, %v625
        %v627 = vadd.f32 %v623, %v626
        %s628 = sld [smem:[#allocation3 + $0x286]]
        %v629 = vstv %s628
        %v630 = vmul.f32 %v420, %v629
        %v631 = vadd.f32 %v627, %v630
        %s632 = sld [smem:[#allocation3 + $0x306]]
        %v633 = vstv %s632
        %v634 = vmul.f32 %v422, %v633
        %v635 = vadd.f32 %v631, %v634
        %s636 = sld [smem:[#allocation5 + $0x6]]
        %v637 = vstv %s636
        %v638 = vadd.f32 %v635, %v637
        %v639 = vmax.f32 %v638, 0.0
        %s640 = sld [smem:[#allocation3 + $0x7]]
        %v641 = vstv %s640
        %v642 = vmul.f32 %v410, %v641
        %s643 = sld [smem:[#allocation3 + $0x87]]
        %v644 = vstv %s643
        %v645 = vmul.f32 %v412, %v644
        %v646 = vadd.f32 %v642, %v645
        %s647 = sld [smem:[#allocation3 + $0x107]]
        %v648 = vstv %s647
        %v649 = vmul.f32 %v414, %v648
        %v650 = vadd.f32 %v646, %v649
        %s651 = sld [smem:[#allocation3 + $0x187]]
        %v652 = vstv %s651
        %v653 = vmul.f32 %v416, %v652
        %v654 = vadd.f32 %v650, %v653
        %s655 = sld [smem:[#allocation3 + $0x207]]
        %v656 = vstv %s655
        %v657 = vmul.f32 %v418, %v656
        %v658 = vadd.f32 %v654, %v657
        %s659 = sld [smem:[#allocation3 + $0x287]]
        %v660 = vstv %s659
        %v661 = vmul.f32 %v420, %v660
        %v662 = vadd.f32 %v658, %v661
        %s663 = sld [smem:[#allocation3 + $0x307]]
        %v664 = vstv %s663
        %v665 = vmul.f32 %v422, %v664
        %v666 = vadd.f32 %v662, %v665
        %s667 = sld [smem:[#allocation5 + $0x7]]
        %v668 = vstv %s667
        %v669 = vadd.f32 %v666, %v668
        %v670 = vmax.f32 %v669, 0.0
        %s671 = sld [smem:[#allocation3 + $0x8]]
        %v672 = vstv %s671
        %v673 = vmul.f32 %v410, %v672
        %s674 = sld [smem:[#allocation3 + $0x88]]
        %v675 = vstv %s674
        %v676 = vmul.f32 %v412, %v675
        %v677 = vadd.f32 %v673, %v676
        %s678 = sld [smem:[#allocation3 + $0x108]]
        %v679 = vstv %s678
        %v680 = vmul.f32 %v414, %v679
        %v681 = vadd.f32 %v677, %v680
        %s682 = sld [smem:[#allocation3 + $0x188]]
        %v683 = vstv %s682
        %v684 = vmul.f32 %v416, %v683
        %v685 = vadd.f32 %v681, %v684
        %s686 = sld [smem:[#allocation3 + $0x208]]
        %v687 = vstv %s686
        %v688 = vmul.f32 %v418, %v687
        %v689 = vadd.f32 %v685, %v688
        %s690 = sld [smem:[#allocation3 + $0x288]]
        %v691 = vstv %s690
        %v692 = vmul.f32 %v420, %v691
        %v693 = vadd.f32 %v689, %v692
        %s694 = sld [smem:[#allocation3 + $0x308]]
        %v695 = vstv %s694
        %v696 = vmul.f32 %v422, %v695
        %v697 = vadd.f32 %v693, %v696
        %s698 = sld [smem:[#allocation5 + $0x8]]
        %v699 = vstv %s698
        %v700 = vadd.f32 %v697, %v699
        %v701 = vmax.f32 %v700, 0.0
        %s702 = sld [smem:[#allocation3 + $0x9]]
        %v703 = vstv %s702
        %v704 = vmul.f32 %v410, %v703
        %s705 = sld [smem:[#allocation3 + $0x89]]
        %v706 = vstv %s705
        %v707 = vmul.f32 %v412, %v706
        %v708 = vadd.f32 %v704, %v707
        %s709 = sld [smem:[#allocation3 + $0x109]]
        %v710 = vstv %s709
        %v711 = vmul.f32 %v414, %v710
        %v712 = vadd.f32 %v708, %v711
        %s713 = sld [smem:[#allocation3 + $0x189]]
        %v714 = vstv %s713
        %v715 = vmul.f32 %v416, %v714
        %v716 = vadd.f32 %v712, %v715
        %s717 = sld [smem:[#allocation3 + $0x209]]
        %v718 = vstv %s717
        %v719 = vmul.f32 %v418, %v718
        %v720 = vadd.f32 %v716, %v719
        %s721 = sld [smem:[#allocation3 + $0x289]]
        %v722 = vstv %s721
        %v723 = vmul.f32 %v420, %v722
        %v724 = vadd.f32 %v720, %v723
        %s725 = sld [smem:[#allocation3 + $0x309]]
        %v726 = vstv %s725
        %v727 = vmul.f32 %v422, %v726
        %v728 = vadd.f32 %v724, %v727
        %s729 = sld [smem:[#allocation5 + $0x9]]
        %v730 = vstv %s729
        %v731 = vadd.f32 %v728, %v730
        %v732 = vmax.f32 %v731, 0.0
        %s733 = sld [smem:[#allocation7]]
        %v734 = vstv %s733
        %v735 = vmul.f32 %v453, %v734
        %s736 = sld [smem:[#allocation7 + $0x80]]
        %v737 = vstv %s736
        %v738 = vmul.f32 %v484, %v737
        %v739 = vadd.f32 %v735, %v738
        %s740 = sld [smem:[#allocation7 + $0x100]]
        %v741 = vstv %s740
        %v742 = vmul.f32 %v515, %v741
        %v743 = vadd.f32 %v739, %v742
        %s744 = sld [smem:[#allocation7 + $0x180]]
        %v745 = vstv %s744
        %v746 = vmul.f32 %v546, %v745
        %v747 = vadd.f32 %v743, %v746
        %s748 = sld [smem:[#allocation7 + $0x200]]
        %v749 = vstv %s748
        %v750 = vmul.f32 %v577, %v749
        %v751 = vadd.f32 %v747, %v750
        %s752 = sld [smem:[#allocation7 + $0x280]]
        %v753 = vstv %s752
        %v754 = vmul.f32 %v608, %v753
        %v755 = vadd.f32 %v751, %v754
        %s756 = sld [smem:[#allocation7 + $0x300]]
        %v757 = vstv %s756
        %v758 = vmul.f32 %v639, %v757
        %v759 = vadd.f32 %v755, %v758
        %s760 = sld [smem:[#allocation7 + $0x380]]
        %v761 = vstv %s760
        %v762 = vmul.f32 %v670, %v761
        %v763 = vadd.f32 %v759, %v762
        %s764 = sld [smem:[#allocation7 + $0x400]]
        %v765 = vstv %s764
        %v766 = vmul.f32 %v701, %v765
        %v767 = vadd.f32 %v763, %v766
        %s768 = sld [smem:[#allocation7 + $0x480]]
        %v769 = vstv %s768
        %v770 = vmul.f32 %v732, %v769
        %v771 = vadd.f32 %v767, %v770
        %s772 = sld [smem:[#allocation8]]
        %v773 = vstv %s772
        %v774 = vadd.f32 %v771, %v773
        %v775 = vmax.f32 %v774, 0.0
        %s776 = sld [smem:[#allocation7 + $0x1]]
        %v777 = vstv %s776
        %v778 = vmul.f32 %v453, %v777
        %s779 = sld [smem:[#allocation7 + $0x81]]
        %v780 = vstv %s779
        %v781 = vmul.f32 %v484, %v780
        %v782 = vadd.f32 %v778, %v781
        %s783 = sld [smem:[#allocation7 + $0x101]]
        %v784 = vstv %s783
        %v785 = vmul.f32 %v515, %v784
        %v786 = vadd.f32 %v782, %v785
        %s787 = sld [smem:[#allocation7 + $0x181]]
        %v788 = vstv %s787
        %v789 = vmul.f32 %v546, %v788
        %v790 = vadd.f32 %v786, %v789
        %s791 = sld [smem:[#allocation7 + $0x201]]
        %v792 = vstv %s791
        %v793 = vmul.f32 %v577, %v792
        %v794 = vadd.f32 %v790, %v793
        %s795 = sld [smem:[#allocation7 + $0x281]]
        %v796 = vstv %s795
        %v797 = vmul.f32 %v608, %v796
        %v798 = vadd.f32 %v794, %v797
        %s799 = sld [smem:[#allocation7 + $0x301]]
        %v800 = vstv %s799
        %v801 = vmul.f32 %v639, %v800
        %v802 = vadd.f32 %v798, %v801
        %s803 = sld [smem:[#allocation7 + $0x381]]
        %v804 = vstv %s803
        %v805 = vmul.f32 %v670, %v804
        %v806 = vadd.f32 %v802, %v805
        %s807 = sld [smem:[#allocation7 + $0x401]]
        %v808 = vstv %s807
        %v809 = vmul.f32 %v701, %v808
        %v810 = vadd.f32 %v806, %v809
        %s811 = sld [smem:[#allocation7 + $0x481]]
        %v812 = vstv %s811
        %v813 = vmul.f32 %v732, %v812
        %v814 = vadd.f32 %v810, %v813
        %s815 = sld [smem:[#allocation8 + $0x1]]
        %v816 = vstv %s815
        %v817 = vadd.f32 %v814, %v816
        %v818 = vmax.f32 %v817, 0.0
        %s819 = sld [smem:[#allocation7 + $0x2]]
        %v820 = vstv %s819
        %v821 = vmul.f32 %v453, %v820
        %s822 = sld [smem:[#allocation7 + $0x82]]
        %v823 = vstv %s822
        %v824 = vmul.f32 %v484, %v823
        %v825 = vadd.f32 %v821, %v824
        %s826 = sld [smem:[#allocation7 + $0x102]]
        %v827 = vstv %s826
        %v828 = vmul.f32 %v515, %v827
        %v829 = vadd.f32 %v825, %v828
        %s830 = sld [smem:[#allocation7 + $0x182]]
        %v831 = vstv %s830
        %v832 = vmul.f32 %v546, %v831
        %v833 = vadd.f32 %v829, %v832
        %s834 = sld [smem:[#allocation7 + $0x202]]
        %v835 = vstv %s834
        %v836 = vmul.f32 %v577, %v835
        %v837 = vadd.f32 %v833, %v836
        %s838 = sld [smem:[#allocation7 + $0x282]]
        %v839 = vstv %s838
        %v840 = vmul.f32 %v608, %v839
        %v841 = vadd.f32 %v837, %v840
        %s842 = sld [smem:[#allocation7 + $0x302]]
        %v843 = vstv %s842
        %v844 = vmul.f32 %v639, %v843
        %v845 = vadd.f32 %v841, %v844
        %s846 = sld [smem:[#allocation7 + $0x382]]
        %v847 = vstv %s846
        %v848 = vmul.f32 %v670, %v847
        %v849 = vadd.f32 %v845, %v848
        %s850 = sld [smem:[#allocation7 + $0x402]]
        %v851 = vstv %s850
        %v852 = vmul.f32 %v701, %v851
        %v853 = vadd.f32 %v849, %v852
        %s854 = sld [smem:[#allocation7 + $0x482]]
        %v855 = vstv %s854
        %v856 = vmul.f32 %v732, %v855
        %v857 = vadd.f32 %v853, %v856
        %s858 = sld [smem:[#allocation8 + $0x2]]
        %v859 = vstv %s858
        %v860 = vadd.f32 %v857, %v859
        %v861 = vmax.f32 %v860, 0.0
        %s862 = sld [smem:[#allocation7 + $0x3]]
        %v863 = vstv %s862
        %v864 = vmul.f32 %v453, %v863
        %s865 = sld [smem:[#allocation7 + $0x83]]
        %v866 = vstv %s865
        %v867 = vmul.f32 %v484, %v866
        %v868 = vadd.f32 %v864, %v867
        %s869 = sld [smem:[#allocation7 + $0x103]]
        %v870 = vstv %s869
        %v871 = vmul.f32 %v515, %v870
        %v872 = vadd.f32 %v868, %v871
        %s873 = sld [smem:[#allocation7 + $0x183]]
        %v874 = vstv %s873
        %v875 = vmul.f32 %v546, %v874
        %v876 = vadd.f32 %v872, %v875
        %s877 = sld [smem:[#allocation7 + $0x203]]
        %v878 = vstv %s877
        %v879 = vmul.f32 %v577, %v878
        %v880 = vadd.f32 %v876, %v879
        %s881 = sld [smem:[#allocation7 + $0x283]]
        %v882 = vstv %s881
        %v883 = vmul.f32 %v608, %v882
        %v884 = vadd.f32 %v880, %v883
        %s885 = sld [smem:[#allocation7 + $0x303]]
        %v886 = vstv %s885
        %v887 = vmul.f32 %v639, %v886
        %v888 = vadd.f32 %v884, %v887
        %s889 = sld [smem:[#allocation7 + $0x383]]
        %v890 = vstv %s889
        %v891 = vmul.f32 %v670, %v890
        %v892 = vadd.f32 %v888, %v891
        %s893 = sld [smem:[#allocation7 + $0x403]]
        %v894 = vstv %s893
        %v895 = vmul.f32 %v701, %v894
        %v896 = vadd.f32 %v892, %v895
        %s897 = sld [smem:[#allocation7 + $0x483]]
        %v898 = vstv %s897
        %v899 = vmul.f32 %v732, %v898
        %v900 = vadd.f32 %v896, %v899
        %s901 = sld [smem:[#allocation8 + $0x3]]
        %v902 = vstv %s901
        %v903 = vadd.f32 %v900, %v902
        %v904 = vmax.f32 %v903, 0.0
        %s905 = sld [smem:[#allocation7 + $0x4]]
        %v906 = vstv %s905
        %v907 = vmul.f32 %v453, %v906
        %s908 = sld [smem:[#allocation7 + $0x84]]
        %v909 = vstv %s908
        %v910 = vmul.f32 %v484, %v909
        %v911 = vadd.f32 %v907, %v910
        %s912 = sld [smem:[#allocation7 + $0x104]]
        %v913 = vstv %s912
        %v914 = vmul.f32 %v515, %v913
        %v915 = vadd.f32 %v911, %v914
        %s916 = sld [smem:[#allocation7 + $0x184]]
        %v917 = vstv %s916
        %v918 = vmul.f32 %v546, %v917
        %v919 = vadd.f32 %v915, %v918
        %s920 = sld [smem:[#allocation7 + $0x204]]
        %v921 = vstv %s920
        %v922 = vmul.f32 %v577, %v921
        %v923 = vadd.f32 %v919, %v922
        %s924 = sld [smem:[#allocation7 + $0x284]]
        %v925 = vstv %s924
        %v926 = vmul.f32 %v608, %v925
        %v927 = vadd.f32 %v923, %v926
        %s928 = sld [smem:[#allocation7 + $0x304]]
        %v929 = vstv %s928
        %v930 = vmul.f32 %v639, %v929
        %v931 = vadd.f32 %v927, %v930
        %s932 = sld [smem:[#allocation7 + $0x384]]
        %v933 = vstv %s932
        %v934 = vmul.f32 %v670, %v933
        %v935 = vadd.f32 %v931, %v934
        %s936 = sld [smem:[#allocation7 + $0x404]]
        %v937 = vstv %s936
        %v938 = vmul.f32 %v701, %v937
        %v939 = vadd.f32 %v935, %v938
        %s940 = sld [smem:[#allocation7 + $0x484]]
        %v941 = vstv %s940
        %v942 = vmul.f32 %v732, %v941
        %v943 = vadd.f32 %v939, %v942
        %s944 = sld [smem:[#allocation8 + $0x4]]
        %v945 = vstv %s944
        %v946 = vadd.f32 %v943, %v945
        %v947 = vmax.f32 %v946, 0.0
        %s948 = sld [smem:[#allocation10]]
        %v949 = vstv %s948
        %v950 = vmul.f32 %v775, %v949
        %s951 = sld [smem:[#allocation10 + $0x80]]
        %v952 = vstv %s951
        %v953 = vmul.f32 %v818, %v952
        %v954 = vadd.f32 %v950, %v953
        %s955 = sld [smem:[#allocation10 + $0x100]]
        %v956 = vstv %s955
        %v957 = vmul.f32 %v861, %v956
        %v958 = vadd.f32 %v954, %v957
        %s959 = sld [smem:[#allocation10 + $0x180]]
        %v960 = vstv %s959
        %v961 = vmul.f32 %v904, %v960
        %v962 = vadd.f32 %v958, %v961
        %s963 = sld [smem:[#allocation10 + $0x200]]
        %v964 = vstv %s963
        %v965 = vmul.f32 %v947, %v964
        %v966 = vadd.f32 %v962, %v965
        %s967 = sld [smem:[#allocation11]]
        %v968 = vstv %s967
        %v969 = vadd.f32 %v966, %v968
        %s970 = sld [smem:[#allocation10 + $0x1]]
        %v971 = vstv %s970
        %v972 = vmul.f32 %v775, %v971
        %s973 = sld [smem:[#allocation10 + $0x81]]
        %v974 = vstv %s973
        %v975 = vmul.f32 %v818, %v974
        %v976 = vadd.f32 %v972, %v975
        %s977 = sld [smem:[#allocation10 + $0x101]]
        %v978 = vstv %s977
        %v979 = vmul.f32 %v861, %v978
        %v980 = vadd.f32 %v976, %v979
        %s981 = sld [smem:[#allocation10 + $0x181]]
        %v982 = vstv %s981
        %v983 = vmul.f32 %v904, %v982
        %v984 = vadd.f32 %v980, %v983
        %s985 = sld [smem:[#allocation10 + $0x201]]
        %v986 = vstv %s985
        %v987 = vmul.f32 %v947, %v986
        %v988 = vadd.f32 %v984, %v987
        %s989 = sld [smem:[#allocation11 + $0x1]]
        %v990 = vstv %s989
        %v991 = vadd.f32 %v988, %v990
        %v992 = vsub.f32 %v991, %v969
        %v993 = vmax.f32 %v969, %v991
        %v994 = vand.u32 2147483647, %v992
        %v995 = vsub.f32 0.0, %v994
        %v996 = vmul.f32 %v995, 1.442695
        %v997 = vpow.pop %v996
        %v998 = vadd.f32 %v997, 1.0
        %v999 = vlog2.pop %v998
        %v1000 = vmul.f32 %v999, 0.6931472
        %v1001 = vadd.f32 %v993, %v1000
        %v1002 = vsub.f32 %v969, %v1001
        %1003 = vst [vmem:[%s409] sm:$0xff] %v1002
        %v1004 = vsub.f32 %v991, %v1001
        %s1005 = scalar_lea.vmem %s409, 8 [#allocation13]
        %1006 = vst [vmem:[%s1005] sm:$0xff] %v1004
        %s1007 = sand.u32 %s182, 1
        %s1008 = sand.u32 %s182, 1
        %s1009 = smul.addr %s1008, 16
        %s1010 = scalar_lea.vmem [#allocation13], %s1009
        // Predicated region
        $region111: #{_lambda_.1} parent=81 // pred_check
          %p1011 = pneg %p192
        $region112: #{_lambda_.1} parent=81 // pred_check_branch
          %1013 = sbr.rel (%p1011) target = $region114
        $region113: #{_lambda_.1} parent=81 // pred_region
          %s1014 = smul.addr %s22, 8
          %s1015 = scalar_lea.vmem %s7, %s1014
          // Predicated region
          $region115: #{_lambda_.1} parent=113 // pred_check
            _
          $region116: #{_lambda_.1} parent=113 // pred_check_branch
            %1017 = sbr.rel (0) target = $region118
          $region117: #{_lambda_.1} parent=113 // pred_region
            // Predicated region
            $region119: #{_lambda_.1} parent=117 // pred_check
              _
            $region120: #{_lambda_.1} parent=117 // pred_check_branch
              %1019 = sbr.rel (0) target = $region122
            $region121: #{_lambda_.1} parent=117 // pred_region
              // Predicated region
              $region134: #{_lambda_.1} parent=121 // pred_check
                _
              $region135: #{_lambda_.1} parent=121 // pred_check_branch
                %1036 = sbr.rel (0) target = $region137
              $region136: #{_lambda_.1} parent=121 // pred_region
                loop: start=0, step=1, limit=1
                $region138: #{_lambda_.1} parent=136 // loop_pre_header
                  _
                $region139: #{_lambda_.1} parent=136 // loop_header
                  %s1038 = sphi 0, %s1042
                  %p1039 = scmp.ge.s32.totalorder %s1038, 1
                  %s1043 = sphi %s1010, %s1010
                  %s1044 = sphi %s1015, %s1015
                $region140: #{_lambda_.1} parent=136 // loop_header_branch
                  %1041 = sbr.rel (%p1039) target = $region144
                $region141: #{_lambda_.1} parent=136 // loop_body
                  %v1045 = vld [vmem:[%s1043] sm:$0xff]
                  %1046 = vst [vmem:[%s1044] sm:$0xff] %v1045
                  %v1047 = vld [vmem:[%s1043 + $0x8] sm:$0xff]
                  %1048 = vst [vmem:[%s1044 + $0x40] sm:$0xff] %v1047
                $region142: #{_lambda_.1} parent=136 // loop_footer
                  %s1042 = sadd.s32 1, %s1038
                $region143: #{_lambda_.1} parent=136 // loop_footer_branch
                  %1037 = sbr.rel target = $region139
                $region144: #{_lambda_.1} parent=136 // loop_exit
                  _
              $region137: #{_lambda_.1} parent=121 // pred_fallthru
                _
              // Predicated region
              $region145: #{_lambda_.1} parent=121 // pred_check
                _
              $region146: #{_lambda_.1} parent=121 // pred_check_branch
                %1050 = sbr.rel target = $region148
              $region147: #{_lambda_.1} parent=121 // pred_region
                _
              $region148: #{_lambda_.1} parent=121 // pred_fallthru
                _
            $region122: #{_lambda_.1} parent=117 // pred_fallthru
              _
            // Predicated region
            $region123: #{_lambda_.1} parent=117 // pred_check
              _
            $region124: #{_lambda_.1} parent=117 // pred_check_branch
              %1021 = sbr.rel target = $region126
            $region125: #{_lambda_.1} parent=117 // pred_region
              loop: start=0, step=1, limit=1
              $region127: #{_lambda_.1} parent=125 // loop_pre_header
                _
              $region128: #{_lambda_.1} parent=125 // loop_header
                %s1024 = sphi 0, %s1028
                %p1025 = scmp.ge.s32.totalorder %s1024, 1
                %s1029 = sphi %s1010, %s1010
                %s1030 = sphi %s1015, %s1015
              $region129: #{_lambda_.1} parent=125 // loop_header_branch
                %1027 = sbr.rel (%p1025) target = $region133
              $region130: #{_lambda_.1} parent=125 // loop_body
                %v1031 = vld [vmem:[%s1029] sm:$0xff]
                %1032 = vst [vmem:[%s1030] sm:$0xff] %v1031
                %v1033 = vld [vmem:[%s1029 + $0x8] sm:$0xff]
                %1034 = vst [vmem:[%s1030 + $0x40] sm:$0xff] %v1033
              $region131: #{_lambda_.1} parent=125 // loop_footer
                %s1028 = sadd.s32 1, %s1024
              $region132: #{_lambda_.1} parent=125 // loop_footer_branch
                %1023 = sbr.rel target = $region128
              $region133: #{_lambda_.1} parent=125 // loop_exit
                _
            $region126: #{_lambda_.1} parent=117 // pred_fallthru
              _
          $region118: #{_lambda_.1} parent=113 // pred_fallthru
            _
          %1051 = vnop
        $region114: #{_lambda_.1} parent=81 // pred_fallthru
          _
      $region82: #{_lambda_.1} parent=5 // pred_fallthru
        _
      %p1052 = scmp.le.s32.totalorder 2, %s17
      // Predicated region
      $region149: #{_lambda_.1} parent=5 // pred_check
        %p1053 = pneg %p1052
      $region150: #{_lambda_.1} parent=5 // pred_check_branch
        %1055 = sbr.rel (%p1053) target = $region152
      $region151: #{_lambda_.1} parent=5 // pred_region
        %s1056 = ssub.s32 %s17, 2
        // Predicated region
        $region153: #{_lambda_.1} parent=151 // pred_check
          %p1057 = pneg %p198
        $region154: #{_lambda_.1} parent=151 // pred_check_branch
          %1059 = sbr.rel (%p1057) target = $region156
        $region155: #{_lambda_.1} parent=151 // pred_region
          %s1060 = sand.u32 %s183, 1
          %s1061 = sand.u32 %s183, 1
          %s1062 = smul.addr %s1061, 16
          %s1063 = scalar_lea.vmem [#allocation13], %s1062
        $region156: #{_lambda_.1} parent=151 // pred_fallthru
          _
      $region152: #{_lambda_.1} parent=5 // pred_fallthru
        _
    $region6: #{_lambda_.1} parent=1 // loop_footer
      %s21 = sadd.s32 1, %s17
    $region7: #{_lambda_.1} parent=1 // loop_footer_branch
      %16 = sbr.rel target = $region3
    $region8: #{_lambda_.1} parent=1 // loop_exit
      _
    %1064 = vsyncpa [#allocation4], 1
    %s1065 = scalar_lea.sflag [#allocation4], 1
    %1066 = vsyncpa %s1065, 1
    %1067 = vsyncpa [#allocation6], 1
    %1068 = vsyncpa [#allocation9], 1
    %1069 = vsyncpa [#allocation12], 1

</llo_original>
